<compile_context>
chip_gen: v6e
topology: v6e:2x2x1
jax: 0.10.0
libtpu: 0.0.40
codegen_flags: <defaults>
</compile_context>

<pallas_src>
import jax
import jax.numpy as jnp
import numpy as np
from jax import lax
from jax.experimental import pallas as pl
from jax.experimental.pallas import tpu as pltpu

_LANE = 128
_SUBLANE = 8


def _round_up(x, m):
    return ((x + m - 1) // m) * m


# --------------------------------------------------------------------------
# Kernel
# --------------------------------------------------------------------------
def _odefunc_kernel(t_ref, y_ref, c_ref, e_ref,
                    w1_ref, w1w2t_ref, wcc_ref, wt_ref, b1_ref,
                    w2_ref, b2_ref,
                    dy_ref, negdiv_ref):
    f32 = jnp.float32
    t = t_ref[0, 0]                       # scalar time from SMEM
    y = y_ref[...]                        # (tb, D)
    c = c_ref[...]                        # (tb, C)
    e = e_ref[...]                        # (tb, D)
    H = w1_ref.shape[1]

    # diffeq hidden layer: z = y@W1 + c@Wc[1:] + t*Wc[0] + b1
    z = (jnp.dot(y, w1_ref[...], preferred_element_type=f32)
         + jnp.dot(c, wcc_ref[...], preferred_element_type=f32)
         + t * wt_ref[...]
         + b1_ref[...])
    h = jnp.tanh(z)                       # (tb, H)

    # diffeq output
    dy = jnp.dot(h, w2_ref[...], preferred_element_type=f32) + b2_ref[...]
    dy_ref[...] = dy.astype(dy_ref.dtype)

    # Hutchinson divergence (closed form for this diffeq):
    #   div = sum_k (1 - h_k^2) * (e@W1)_k * (e@W2^T)_k
    # One lane-dense 2H-wide MXU pass over e gives u = e@W1 and v = e@W2^T.
    uv = jnp.dot(e, w1w2t_ref[...], preferred_element_type=f32)   # (tb, 2H)
    u = uv[:, :H]
    v = uv[:, H:]
    g = (1.0 - h * h) * u * v                                     # (tb, H)

    # Reduce over H *and* land the result lane-major in one MXU pass:
    #   ones(8, H) @ g^T -> (8, tb); every row holds the per-batch divergence.
    # The store to the (1, tb) output block is then an unmasked, lane-dense vst
    # (vs. the old 1-lane-masked (tb, 1) column block).
    ones_rows = jnp.ones((8, H), dtype=f32)
    div_rows = lax.dot_general(ones_rows, g, (((1,), (1,)), ((), ())),
                               preferred_element_type=f32)        # (8, tb)
    negdiv_ref[...] = (-div_rows[0:1, :]).astype(negdiv_ref.dtype)


# --------------------------------------------------------------------------
# Host-side sizing helpers
# --------------------------------------------------------------------------
def _vmem_capacity_bytes():
    """Physical VMEM of the local chip; conservative (v7x) fallback."""
    try:
        info = pltpu.get_tpu_info()
        return int(getattr(info, "vmem_capacity_bytes", 64 * 1024 * 1024))
    except Exception:
        return 64 * 1024 * 1024


def _tile_vmem_bytes(tb, d, c, h):
    """Upper-bound VMEM footprint of one grid step (lane-padded, 2x-buffered)."""
    pad = lambda n: _round_up(max(n, 1), _LANE)
    per_row = (3 * pad(d) + pad(c)) * 4             # y, e, dy blocks + c block
    negdiv = _SUBLANE * pad(tb) * 4                 # (1, tb) row block
    weights = (d * pad(2 * h)                       # [W1 | W2^T]
               + d * pad(h) + c * pad(h)            # W1, Wc[1:]
               + 2 * pad(h)                         # Wc[0], b1
               + h * pad(d) + pad(d)) * 4           # W2, b2
    return 2 * (per_row * tb + negdiv + weights)


def _pick_tile(batch, block_b, d, c, h, budget):
    # Small batches: one tile, every block equals the full array dims, so all
    # (8, 128) block constraints are trivially satisfied.
    if batch < 2 * _LANE:
        return batch
    # Multi-tile: the lane-dense (1, tb) negdiv block needs tb % 128 == 0, and
    # >= 2 tiles lets dimension_semantics=("parallel",) shard the batch across
    # v7x's two TensorCores (one extra ~0.35us grid step on v5e/v6e is noise).
    two_way = _round_up(pl.cdiv(batch, 2), _LANE)
    tb = min(max(block_b, _LANE), two_way)
    tb = max(_LANE, (tb // _LANE) * _LANE)
    while tb > _LANE and _tile_vmem_bytes(tb, d, c, h) > budget:
        tb -= _LANE
    return tb


# --------------------------------------------------------------------------
# Parameter prep (once, outside the ODE integration loop)
# --------------------------------------------------------------------------
def prepare_params(w1, wc, b1, w2, b2):
    """Split Wc into its t-row / c-rows and build the fused [W1 | W2^T] weight."""
    wt = wc[0:1, :]                                             # (1, H)  time row
    wcc = wc[1:, :]                                             # (C, H)  condition rows
    w1w2t = jnp.concatenate([w1, jnp.transpose(w2)], axis=1)    # (D, 2H) probe weights
    return (w1, w1w2t, wcc, wt, b1, w2, b2)


# --------------------------------------------------------------------------
# Wrapper
# --------------------------------------------------------------------------
def odefunc_forward(t, states, e, prepared_params, *, block_b=4096):
    """Pallas replica of ODEfunc.forward (calc_density=True, approximate div).

    states = (y, c, logp, *extras); returns
    (dy, zeros_like(c), -divergence, *[zeros_like(s) for s in extras]).
    """
    assert len(states) >= 3
    y, c = states[0], states[1]
    extras = states[3:]

    B, D = y.shape
    c2 = c.reshape(B, -1)
    C = c2.shape[1]
    w1, w1w2t, wcc, wt, b1, w2, b2 = prepared_params
    H = w1.shape[1]

    vmem_cap = _vmem_capacity_bytes()
    budget = (vmem_cap * 3) // 5                     # per-tile footprint budget
    tb = _pick_tile(B, block_b, D, C, H, budget)
    num_tiles = pl.cdiv(B, tb)

    footprint = _tile_vmem_bytes(tb, D, C, H)
    vmem_limit = int(min(vmem_cap - (8 << 20),
                         max(footprint + footprint // 2, 24 << 20)))

    t_arr = jnp.asarray(t, dtype=y.dtype).reshape(1, 1)

    row_spec = lambda cols: pl.BlockSpec((tb, cols), lambda i: (i, 0))
    const_spec = lambda shape: pl.BlockSpec(shape, lambda i: (0, 0))

    dy, negdiv_row = pl.pallas_call(
        _odefunc_kernel,
        grid=(num_tiles,),
        in_specs=[
            pl.BlockSpec(memory_space=pltpu.MemorySpace.SMEM),  # t  (1, 1) scalar
            row_spec(D),                # y
            row_spec(C),                # c
            row_spec(D),                # e
            const_spec((D, H)),         # W1            (VMEM-resident across tiles)
            const_spec((D, 2 * H)),     # [W1 | W2^T]   (lane-dense probe weights)
            const_spec((C, H)),         # Wc[1:]        (condition rows)
            const_spec((1, H)),         # Wc[0:1]       (time row)
            const_spec((1, H)),         # b1
            const_spec((H, D)),         # W2
            const_spec((1, D)),         # b2
        ],
        out_specs=(
            pl.BlockSpec((tb, D), lambda i: (i, 0)),   # dy    (caller layout)
            pl.BlockSpec((1, tb), lambda i: (0, i)),   # -div  (lane-dense row)
        ),
        out_shape=(jax.ShapeDtypeStruct((B, D), y.dtype),
                   jax.ShapeDtypeStruct((1, B), y.dtype)),
        compiler_params=pltpu.CompilerParams(
            dimension_semantics=("parallel",),
            vmem_limit_bytes=vmem_limit),
    )(t_arr, y, c2, e, w1, w1w2t, wcc, wt, b1, w2, b2)

    neg_div = negdiv_row.reshape(B, 1)   # (1, B) -> (B, 1): contiguous, free

    return tuple([dy, jnp.zeros_like(c), neg_div]
                 + [jnp.zeros_like(s_) for s_ in extras])


# --------------------------------------------------------------------------
# Pure-JAX reference (autodiff) and self-test
# --------------------------------------------------------------------------
def _reference_forward(t, states, e, params):
    y, c = states[0], states[1]
    B = y.shape[0]
    t_col = jnp.ones((B, 1), dtype=y.dtype) * jnp.asarray(t, dtype=y.dtype)
    tc = jnp.concatenate([t_col, c.reshape(B, -1)], axis=1)
    w1, wc, b1, w2, b2 = params

    def diffeq(y_):
        h = jnp.tanh(y_ @ w1 + tc @ wc + b1)
        return h @ w2 + b2

    dy, vjp_fn = jax.vjp(diffeq, y)
    (e_dzdx,) = vjp_fn(e)
    div = jnp.sum((e_dzdx * e).reshape(B, -1), axis=1, keepdims=True)
    return dy, -div


if __name__ == "__main__":
    key = jax.random.PRNGKey(0)
    # B=256 -> tile picker gives tb=128, grid=(2,): exercises the multi-tile
    # path and the >=2-tile megacore split while staying small.
    B, D, C, H = 256, 16, 7, 64     # batch, state dim, condition dim, hidden
    TC = 1 + C

    ks = jax.random.split(key, 8)
    y = jax.random.normal(ks[0], (B, D), dtype=jnp.float32)
    c = jax.random.normal(ks[1], (B, C), dtype=jnp.float32)
    logp = jnp.zeros((B, 1), dtype=jnp.float32)
    extra = jnp.zeros((B, 3), dtype=jnp.float32)             # an extra state
    e = jax.random.normal(ks[2], (B, D), dtype=jnp.float32)  # sample_gaussian_like(y)

    # deterministic diffeq parameters
    w1 = jax.random.normal(ks[3], (D, H), dtype=jnp.float32) * 0.1
    wc = jax.random.normal(ks[4], (TC, H), dtype=jnp.float32) * 0.1
    b1 = jax.random.normal(ks[5], (1, H), dtype=jnp.float32) * 0.1
    w2 = jax.random.normal(ks[6], (H, D), dtype=jnp.float32) * 0.1
    b2 = jax.random.normal(ks[7], (1, D), dtype=jnp.float32) * 0.1
    raw_params = (w1, wc, b1, w2, b2)

    # one-time prep (lives outside the ODE integration loop)
    prepared = prepare_params(*raw_params)

    t = 0.37
    states = (y, c, logp, extra)

    out = odefunc_forward(t, states, e, prepared)
    out = jax.block_until_ready(out)
    dy_k, zc_k, negdiv_k, zext_k = out

    # verify against pure-JAX autodiff reference
    dy_ref, negdiv_ref = _reference_forward(t, states, e, raw_params)
    np.testing.assert_allclose(np.asarray(dy_k), np.asarray(dy_ref),
                               rtol=1e-5, atol=1e-5)
    np.testing.assert_allclose(np.asarray(negdiv_k), np.asarray(negdiv_ref),
                               rtol=1e-4, atol=1e-4)
    assert zc_k.shape == c.shape and not np.any(np.asarray(zc_k))
    assert zext_k.shape == extra.shape and not np.any(np.asarray(zext_k))

    print("KERNEL_OK")
</pallas_src>

<mosaic_0001>
module attributes {stable_mosaic.version = 11 : i64} {
  func.func @_odefunc_kernel(%arg0: i32, %arg1: memref<1x1xf32, #tpu.memory_space<smem>>, %arg2: memref<128x16xf32, #tpu.memory_space<vmem>>, %arg3: memref<128x7xf32, #tpu.memory_space<vmem>>, %arg4: memref<128x16xf32, #tpu.memory_space<vmem>>, %arg5: memref<16x64xf32, #tpu.memory_space<vmem>>, %arg6: memref<16x128xf32, #tpu.memory_space<vmem>>, %arg7: memref<7x64xf32, #tpu.memory_space<vmem>>, %arg8: memref<1x64xf32, #tpu.memory_space<vmem>>, %arg9: memref<1x64xf32, #tpu.memory_space<vmem>>, %arg10: memref<64x16xf32, #tpu.memory_space<vmem>>, %arg11: memref<1x16xf32, #tpu.memory_space<vmem>>, %arg12: memref<128x16xf32, #tpu.memory_space<vmem>>, %arg13: memref<1x128xf32, #tpu.memory_space<vmem>>) attributes {dimension_semantics = [#tpu.dimension_semantics<parallel>], iteration_bounds = array<i64: 2>, scalar_prefetch = 0 : i64, scratch_operands = 0 : i64, tpu.core_type = #tpu.core_type<tc>, window_params = [{transform_indices = @transform_0, window_bounds = array<i64: 1, 1>}, {transform_indices = @transform_1, window_bounds = array<i64: 128, 16>}, {transform_indices = @transform_2, window_bounds = array<i64: 128, 7>}, {transform_indices = @transform_3, window_bounds = array<i64: 128, 16>}, {pipeline_mode = #tpu.pipeline_mode<synchronous>, transform_indices = @transform_4, window_bounds = array<i64: 16, 64>}, {pipeline_mode = #tpu.pipeline_mode<synchronous>, transform_indices = @transform_5, window_bounds = array<i64: 16, 128>}, {pipeline_mode = #tpu.pipeline_mode<synchronous>, transform_indices = @transform_6, window_bounds = array<i64: 7, 64>}, {pipeline_mode = #tpu.pipeline_mode<synchronous>, transform_indices = @transform_7, window_bounds = array<i64: 1, 64>}, {pipeline_mode = #tpu.pipeline_mode<synchronous>, transform_indices = @transform_8, window_bounds = array<i64: 1, 64>}, {pipeline_mode = #tpu.pipeline_mode<synchronous>, transform_indices = @transform_9, window_bounds = array<i64: 64, 16>}, {pipeline_mode = #tpu.pipeline_mode<synchronous>, transform_indices = @transform_10, window_bounds = array<i64: 1, 16>}, {transform_indices = @transform_11, window_bounds = array<i64: 128, 16>}, {transform_indices = @transform_12, window_bounds = array<i64: 1, 128>}]} {
    %c0 = arith.constant 0 : index
    %c0_0 = arith.constant 0 : index
    %0 = memref.load %arg1[%c0, %c0_0] : memref<1x1xf32, #tpu.memory_space<smem>>
    %c0_1 = arith.constant 0 : index
    %c0_2 = arith.constant 0 : index
    %1 = vector.load %arg2[%c0_1, %c0_2] : memref<128x16xf32, #tpu.memory_space<vmem>>, vector<128x16xf32>
    %c0_3 = arith.constant 0 : index
    %c0_4 = arith.constant 0 : index
    %2 = vector.load %arg3[%c0_3, %c0_4] : memref<128x7xf32, #tpu.memory_space<vmem>>, vector<128x7xf32>
    %c0_5 = arith.constant 0 : index
    %c0_6 = arith.constant 0 : index
    %3 = vector.load %arg4[%c0_5, %c0_6] : memref<128x16xf32, #tpu.memory_space<vmem>>, vector<128x16xf32>
    %c0_7 = arith.constant 0 : index
    %c0_8 = arith.constant 0 : index
    %4 = vector.load %arg5[%c0_7, %c0_8] : memref<16x64xf32, #tpu.memory_space<vmem>>, vector<16x64xf32>
    %cst = arith.constant dense<0.000000e+00> : vector<128x64xf32>
    %5 = tpu.matmul %1, %4, %cst {dimension_numbers = #tpu.dot_dimension_numbers<[1], [0], [0], [1], [0, 0, 1, 1], [], []>} : vector<128x16xf32>, vector<16x64xf32>, vector<128x64xf32> -> vector<128x64xf32>
    %c0_9 = arith.constant 0 : index
    %c0_10 = arith.constant 0 : index
    %6 = vector.load %arg7[%c0_9, %c0_10] : memref<7x64xf32, #tpu.memory_space<vmem>>, vector<7x64xf32>
    %cst_11 = arith.constant dense<0.000000e+00> : vector<128x64xf32>
    %7 = tpu.matmul %2, %6, %cst_11 {dimension_numbers = #tpu.dot_dimension_numbers<[1], [0], [0], [1], [0, 0, 1, 1], [], []>} : vector<128x7xf32>, vector<7x64xf32>, vector<128x64xf32> -> vector<128x64xf32>
    %8 = arith.addf %5, %7 : vector<128x64xf32>
    %c0_12 = arith.constant 0 : index
    %c0_13 = arith.constant 0 : index
    %9 = vector.load %arg8[%c0_12, %c0_13] : memref<1x64xf32, #tpu.memory_space<vmem>>, vector<1x64xf32>
    %10 = vector.broadcast %0 : f32 to vector<1x64xf32>
    %11 = arith.mulf %10, %9 : vector<1x64xf32>
    %12 = vector.broadcast %11 : vector<1x64xf32> to vector<128x64xf32>
    %13 = arith.addf %8, %12 : vector<128x64xf32>
    %c0_14 = arith.constant 0 : index
    %c0_15 = arith.constant 0 : index
    %14 = vector.load %arg9[%c0_14, %c0_15] : memref<1x64xf32, #tpu.memory_space<vmem>>, vector<1x64xf32>
    %15 = vector.broadcast %14 : vector<1x64xf32> to vector<128x64xf32>
    %16 = arith.addf %13, %15 : vector<128x64xf32>
    %17 = math.tanh %16 : vector<128x64xf32>
    %c0_16 = arith.constant 0 : index
    %c0_17 = arith.constant 0 : index
    %18 = vector.load %arg10[%c0_16, %c0_17] : memref<64x16xf32, #tpu.memory_space<vmem>>, vector<64x16xf32>
    %cst_18 = arith.constant dense<0.000000e+00> : vector<128x16xf32>
    %19 = tpu.matmul %17, %18, %cst_18 {dimension_numbers = #tpu.dot_dimension_numbers<[1], [0], [0], [1], [0, 0, 1, 1], [], []>} : vector<128x64xf32>, vector<64x16xf32>, vector<128x16xf32> -> vector<128x16xf32>
    %c0_19 = arith.constant 0 : index
    %c0_20 = arith.constant 0 : index
    %20 = vector.load %arg11[%c0_19, %c0_20] : memref<1x16xf32, #tpu.memory_space<vmem>>, vector<1x16xf32>
    %21 = vector.broadcast %20 : vector<1x16xf32> to vector<128x16xf32>
    %22 = arith.addf %19, %21 : vector<128x16xf32>
    %c0_21 = arith.constant 0 : index
    %c0_22 = arith.constant 0 : index
    %23 = vector.load %arg12[%c0_21, %c0_22] : memref<128x16xf32, #tpu.memory_space<vmem>>, vector<128x16xf32>
    tpu.vector_store %arg12[%c0_21, %c0_22], %22 {strides = array<i32>} : memref<128x16xf32, #tpu.memory_space<vmem>>, vector<128x16xf32>,
    %c0_23 = arith.constant 0 : index
    %c0_24 = arith.constant 0 : index
    %24 = vector.load %arg6[%c0_23, %c0_24] : memref<16x128xf32, #tpu.memory_space<vmem>>, vector<16x128xf32>
    %cst_25 = arith.constant dense<0.000000e+00> : vector<128x128xf32>
    %25 = tpu.matmul %3, %24, %cst_25 {dimension_numbers = #tpu.dot_dimension_numbers<[1], [0], [0], [1], [0, 0, 1, 1], [], []>} : vector<128x16xf32>, vector<16x128xf32>, vector<128x128xf32> -> vector<128x128xf32>
    %26 = vector.extract_strided_slice %25 {offsets = [0, 0], sizes = [128, 64], strides = [1, 1]} : vector<128x128xf32> to vector<128x64xf32>
    %27 = vector.extract_strided_slice %25 {offsets = [0, 64], sizes = [128, 64], strides = [1, 1]} : vector<128x128xf32> to vector<128x64xf32>
    %28 = arith.mulf %17, %17 : vector<128x64xf32>
    %cst_26 = arith.constant 1.000000e+00 : f32
    %29 = vector.broadcast %cst_26 : f32 to vector<128x64xf32>
    %30 = arith.subf %29, %28 : vector<128x64xf32>
    %31 = arith.mulf %30, %26 : vector<128x64xf32>
    %32 = arith.mulf %31, %27 : vector<128x64xf32>
    %cst_27 = arith.constant 1.000000e+00 : f32
    %33 = vector.broadcast %cst_27 : f32 to vector<8x64xf32>
    %cst_28 = arith.constant dense<0.000000e+00> : vector<8x128xf32>
    %34 = tpu.matmul %33, %32, %cst_28 {dimension_numbers = #tpu.dot_dimension_numbers<[1], [1], [0], [0], [0, 0, 1, 0], [], []>} : vector<8x64xf32>, vector<128x64xf32>, vector<8x128xf32> -> vector<8x128xf32>
    %35 = vector.extract_strided_slice %34 {offsets = [0, 0], sizes = [1, 128], strides = [1, 1]} : vector<8x128xf32> to vector<1x128xf32>
    %cst_29 = arith.constant 0.000000e+00 : f32
    %36 = vector.broadcast %cst_29 : f32 to vector<1x128xf32>
    %37 = arith.subf %36, %35 : vector<1x128xf32>
    %c0_30 = arith.constant 0 : index
    %c0_31 = arith.constant 0 : index
    %38 = vector.load %arg13[%c0_30, %c0_31] : memref<1x128xf32, #tpu.memory_space<vmem>>, vector<1x128xf32>
    tpu.vector_store %arg13[%c0_30, %c0_31], %37 {strides = array<i32>} : memref<1x128xf32, #tpu.memory_space<vmem>>, vector<1x128xf32>,
    return
  }
  func.func @transform_0(%arg0: i32) -> (i32, i32) {
    %c0_i32 = arith.constant 0 : i32
    %c0_i32_0 = arith.constant 0 : i32
    %c0_i32_1 = arith.constant 0 : i32
    return %c0_i32, %c0_i32_0 : i32, i32
  }
  func.func @transform_1(%arg0: i32) -> (i32, i32) {
    %c0_i32 = arith.constant 0 : i32
    %c0_i32_0 = arith.constant 0 : i32
    return %arg0, %c0_i32 : i32, i32
  }
  func.func @transform_2(%arg0: i32) -> (i32, i32) {
    %c0_i32 = arith.constant 0 : i32
    %c0_i32_0 = arith.constant 0 : i32
    return %arg0, %c0_i32 : i32, i32
  }
  func.func @transform_3(%arg0: i32) -> (i32, i32) {
    %c0_i32 = arith.constant 0 : i32
    %c0_i32_0 = arith.constant 0 : i32
    return %arg0, %c0_i32 : i32, i32
  }
  func.func @transform_4(%arg0: i32) -> (i32, i32) {
    %c0_i32 = arith.constant 0 : i32
    %c0_i32_0 = arith.constant 0 : i32
    %c0_i32_1 = arith.constant 0 : i32
    return %c0_i32, %c0_i32_0 : i32, i32
  }
  func.func @transform_5(%arg0: i32) -> (i32, i32) {
    %c0_i32 = arith.constant 0 : i32
    %c0_i32_0 = arith.constant 0 : i32
    %c0_i32_1 = arith.constant 0 : i32
    return %c0_i32, %c0_i32_0 : i32, i32
  }
  func.func @transform_6(%arg0: i32) -> (i32, i32) {
    %c0_i32 = arith.constant 0 : i32
    %c0_i32_0 = arith.constant 0 : i32
    %c0_i32_1 = arith.constant 0 : i32
    return %c0_i32, %c0_i32_0 : i32, i32
  }
  func.func @transform_7(%arg0: i32) -> (i32, i32) {
    %c0_i32 = arith.constant 0 : i32
    %c0_i32_0 = arith.constant 0 : i32
    %c0_i32_1 = arith.constant 0 : i32
    return %c0_i32, %c0_i32_0 : i32, i32
  }
  func.func @transform_8(%arg0: i32) -> (i32, i32) {
    %c0_i32 = arith.constant 0 : i32
    %c0_i32_0 = arith.constant 0 : i32
    %c0_i32_1 = arith.constant 0 : i32
    return %c0_i32, %c0_i32_0 : i32, i32
  }
  func.func @transform_9(%arg0: i32) -> (i32, i32) {
    %c0_i32 = arith.constant 0 : i32
    %c0_i32_0 = arith.constant 0 : i32
    %c0_i32_1 = arith.constant 0 : i32
    return %c0_i32, %c0_i32_0 : i32, i32
  }
  func.func @transform_10(%arg0: i32) -> (i32, i32) {
    %c0_i32 = arith.constant 0 : i32
    %c0_i32_0 = arith.constant 0 : i32
    %c0_i32_1 = arith.constant 0 : i32
    return %c0_i32, %c0_i32_0 : i32, i32
  }
  func.func @transform_11(%arg0: i32) -> (i32, i32) {
    %c0_i32 = arith.constant 0 : i32
    %c0_i32_0 = arith.constant 0 : i32
    return %arg0, %c0_i32 : i32, i32
  }
  func.func @transform_12(%arg0: i32) -> (i32, i32) {
    %c0_i32 = arith.constant 0 : i32
    %c0_i32_0 = arith.constant 0 : i32
    return %c0_i32, %arg0 : i32, i32
  }
}

</mosaic_0001>

<llo_original>
// kernel: tpu_custom_call.1
$region0: #{tpu_custom_call.1}
  #allocation0 [shape = 'u32[]', space=smem, size = 0x4, offset = 0x4, fixed_abs, tag = 'smem constant byte address 0x4 - core index']
  #allocation1 [shape = 'u32[144,128]{1,0:T(1,128)}', space=vmem, size = 0x12000, scoped, tag = 'internal scratch']
  #allocation2 [shape = 'f32[1,1]{1,0:T(1,128)S(6)}', space=smem, size = 0x200, scoped, tag = 'scoped memory for tpu_custom_call.1']
  %s0 = inlined_call_operand.<no memory space> [shape: f32[1,1], index: 0, kind: input, shape index: {}]
  %s1 = inlined_call_operand.vmem [shape: f32[256,16], index: 1, kind: input, shape index: {}]
  %s2 = inlined_call_operand.vmem [shape: f32[256,7], index: 2, kind: input, shape index: {}]
  %s3 = inlined_call_operand.vmem [shape: f32[256,16], index: 3, kind: input, shape index: {}]
  %s4 = inlined_call_operand.vmem [shape: f32[16,64], index: 4, kind: input, shape index: {}]
  %s5 = inlined_call_operand.vmem [shape: f32[16,128], index: 5, kind: input, shape index: {}]
  %s6 = inlined_call_operand.vmem [shape: f32[7,64], index: 6, kind: input, shape index: {}]
  %s7 = inlined_call_operand.vmem [shape: f32[1,64], index: 7, kind: input, shape index: {}]
  %s8 = inlined_call_operand.vmem [shape: f32[1,64], index: 8, kind: input, shape index: {}]
  %s9 = inlined_call_operand.vmem [shape: f32[64,16], index: 9, kind: input, shape index: {}]
  %s10 = inlined_call_operand.vmem [shape: f32[1,16], index: 10, kind: input, shape index: {}]
  %s11 = inlined_call_operand.vmem [shape: f32[256,16], index: 11, kind: output, shape index: {0}]
  %s12 = inlined_call_operand.hbm [shape: f32[1,256], index: 12, kind: output, shape index: {1}]
  %13 = xla_tuple %s11, %s12
  %s14 = sld [smem:[#allocation0]]
  $region85: #{tpu_custom_call.1} parent=0
    _
  %s16 = ssub.s32 1, %s14
  %s17 = scalar_select 0, %s16, %s14
  %18 = sst [smem:[#allocation2]] %s0
  $region1: #{tpu_custom_call.1} parent=0
    #allocation3 [shape = 'u8[1024]{0}', space=vmem, size = 0x400, scoped, tag = 'output window, operand 1']
    #allocation4 [shape = 's32[2]{0}', space=sflag, size = 0x8, scoped, tag = 'scoped memory for tpu_custom_call.1']
    %19 = vsyncpa [#allocation4], 0
    %s20 = scalar_lea.sflag [#allocation4], 1
    %21 = vsyncpa %s20, 0
    loop: start=0, step=1, limit=4
    $region2: #{tpu_custom_call.1} parent=1 // loop_pre_header
      _
    $region3: #{tpu_custom_call.1} parent=1 // loop_header
      %s23 = sphi 0, %s27
      %p24 = scmp.ge.s32.totalorder %s23, 4
      %s31 = sphi 0, %s31
      %s33 = sphi 0, %s31
      %s34 = sphi 0, %s33
      %s48 = sphi 0, %s34
      %s54 = sphi 0, %s56
      %s57 = sphi 0, %s54
      %s58 = sphi 0, %s57
      %s74 = sphi 0, %s58
      %s80 = sphi 0, %s82
      %s83 = sphi 0, %s80
      %s84 = sphi 0, %s83
      %s100 = sphi 0, %s84
      %s106 = sphi 0, %s108
      %s109 = sphi 0, %s106
      %s110 = sphi 0, %s109
      %s126 = sphi 0, %s110
      %s130 = sphi 0, %s130
      %s132 = sphi 0, %s130
      %s133 = sphi 0, %s132
      %s147 = sphi 0, %s133
      %s151 = sphi 0, %s151
      %s153 = sphi 0, %s151
      %s154 = sphi 0, %s153
      %s168 = sphi 0, %s154
      %s172 = sphi 0, %s172
      %s174 = sphi 0, %s172
      %s175 = sphi 0, %s174
      %s189 = sphi 0, %s175
      %s193 = sphi 0, %s193
      %s195 = sphi 0, %s193
      %s196 = sphi 0, %s195
      %s210 = sphi 0, %s196
      %s214 = sphi 0, %s214
      %s216 = sphi 0, %s214
      %s217 = sphi 0, %s216
      %s231 = sphi 0, %s217
      %s235 = sphi 0, %s235
      %s237 = sphi 0, %s235
      %s238 = sphi 0, %s237
      %s252 = sphi 0, %s238
      %s256 = sphi 0, %s256
      %s258 = sphi 0, %s256
      %s259 = sphi 0, %s258
      %s273 = sphi 0, %s259
      %s279 = sphi 0, %s281
      %s282 = sphi 0, %s279
      %s283 = sphi 0, %s282
      %s299 = sphi 0, %s283
      %s305 = sphi 0, %s307
      %s308 = sphi 0, %s305
      %s309 = sphi 0, %s308
      %s325 = sphi 0, %s309
    $region4: #{tpu_custom_call.1} parent=1 // loop_header_branch
      %26 = sbr.rel (%p24) target = $region8
    $region5: #{tpu_custom_call.1} parent=1 // loop_body
      %s28 = ssub.s32 %s23, 1
      %s29 = ssub.s32 %s23, 2
      %s30 = sadd.s32 %s23, 1
      %s32 = sadd.s32 %s31, 1
      %p35 = scmp.eq.s32.totalorder %s23, 1
      %p36 = scmp.ne.s32.totalorder %s31, %s33
      %p37 = scmp.eq.s32.totalorder %s23, 0
      %p38 = por %p36, %p37
      %p39 = scmp.ne.s32.totalorder %s31, %s33
      %p40 = scmp.eq.s32.totalorder %s28, 1
      %p41 = por %p39, %p40
      %p42 = scmp.ne.s32.totalorder %s33, %s34
      %p43 = scmp.eq.s32.totalorder %s28, 0
      %p44 = por %p42, %p43
      %p45 = scmp.ne.s32.totalorder %s33, %s34
      %p46 = scmp.eq.s32.totalorder %s29, 1
      %p47 = por %p45, %p46
      %p49 = scmp.ne.s32.totalorder %s34, %s48
      %p50 = scmp.eq.s32.totalorder %s29, 0
      %p51 = por %p49, %p50
      %s52 = ssub.s32 %s23, %s30
      %p53 = scmp.eq.s32.totalorder %s52, 0
      %s55 = sadd.s32 %s54, 1
      %s56 = scalar_select %p53, %s54, %s55
      %p59 = pneg %p53
      %p60 = scmp.eq.s32.totalorder %s23, 1
      %p61 = por %p59, %p60
      %p62 = scmp.ne.s32.totalorder %s54, %s57
      %p63 = scmp.eq.s32.totalorder %s23, 0
      %p64 = por %p62, %p63
      %p65 = scmp.ne.s32.totalorder %s54, %s57
      %p66 = scmp.eq.s32.totalorder %s28, 1
      %p67 = por %p65, %p66
      %p68 = scmp.ne.s32.totalorder %s57, %s58
      %p69 = scmp.eq.s32.totalorder %s28, 0
      %p70 = por %p68, %p69
      %p71 = scmp.ne.s32.totalorder %s57, %s58
      %p72 = scmp.eq.s32.totalorder %s29, 1
      %p73 = por %p71, %p72
      %p75 = scmp.ne.s32.totalorder %s58, %s74
      %p76 = scmp.eq.s32.totalorder %s29, 0
      %p77 = por %p75, %p76
      %s78 = ssub.s32 %s23, %s30
      %p79 = scmp.eq.s32.totalorder %s78, 0
      %s81 = sadd.s32 %s80, 1
      %s82 = scalar_select %p79, %s80, %s81
      %p85 = pneg %p79
      %p86 = scmp.eq.s32.totalorder %s23, 1
      %p87 = por %p85, %p86
      %p88 = scmp.ne.s32.totalorder %s80, %s83
      %p89 = scmp.eq.s32.totalorder %s23, 0
      %p90 = por %p88, %p89
      %p91 = scmp.ne.s32.totalorder %s80, %s83
      %p92 = scmp.eq.s32.totalorder %s28, 1
      %p93 = por %p91, %p92
      %p94 = scmp.ne.s32.totalorder %s83, %s84
      %p95 = scmp.eq.s32.totalorder %s28, 0
      %p96 = por %p94, %p95
      %p97 = scmp.ne.s32.totalorder %s83, %s84
      %p98 = scmp.eq.s32.totalorder %s29, 1
      %p99 = por %p97, %p98
      %p101 = scmp.ne.s32.totalorder %s84, %s100
      %p102 = scmp.eq.s32.totalorder %s29, 0
      %p103 = por %p101, %p102
      %s104 = ssub.s32 %s23, %s30
      %p105 = scmp.eq.s32.totalorder %s104, 0
      %s107 = sadd.s32 %s106, 1
      %s108 = scalar_select %p105, %s106, %s107
      %p111 = pneg %p105
      %p112 = scmp.eq.s32.totalorder %s23, 1
      %p113 = por %p111, %p112
      %p114 = scmp.ne.s32.totalorder %s106, %s109
      %p115 = scmp.eq.s32.totalorder %s23, 0
      %p116 = por %p114, %p115
      %p117 = scmp.ne.s32.totalorder %s106, %s109
      %p118 = scmp.eq.s32.totalorder %s28, 1
      %p119 = por %p117, %p118
      %p120 = scmp.ne.s32.totalorder %s109, %s110
      %p121 = scmp.eq.s32.totalorder %s28, 0
      %p122 = por %p120, %p121
      %p123 = scmp.ne.s32.totalorder %s109, %s110
      %p124 = scmp.eq.s32.totalorder %s29, 1
      %p125 = por %p123, %p124
      %p127 = scmp.ne.s32.totalorder %s110, %s126
      %p128 = scmp.eq.s32.totalorder %s29, 0
      %p129 = por %p127, %p128
      %s131 = sadd.s32 %s130, 1
      %p134 = scmp.eq.s32.totalorder %s23, 1
      %p135 = scmp.ne.s32.totalorder %s130, %s132
      %p136 = scmp.eq.s32.totalorder %s23, 0
      %p137 = por %p135, %p136
      %p138 = scmp.ne.s32.totalorder %s130, %s132
      %p139 = scmp.eq.s32.totalorder %s28, 1
      %p140 = por %p138, %p139
      %p141 = scmp.ne.s32.totalorder %s132, %s133
      %p142 = scmp.eq.s32.totalorder %s28, 0
      %p143 = por %p141, %p142
      %p144 = scmp.ne.s32.totalorder %s132, %s133
      %p145 = scmp.eq.s32.totalorder %s29, 1
      %p146 = por %p144, %p145
      %p148 = scmp.ne.s32.totalorder %s133, %s147
      %p149 = scmp.eq.s32.totalorder %s29, 0
      %p150 = por %p148, %p149
      %s152 = sadd.s32 %s151, 1
      %p155 = scmp.eq.s32.totalorder %s23, 1
      %p156 = scmp.ne.s32.totalorder %s151, %s153
      %p157 = scmp.eq.s32.totalorder %s23, 0
      %p158 = por %p156, %p157
      %p159 = scmp.ne.s32.totalorder %s151, %s153
      %p160 = scmp.eq.s32.totalorder %s28, 1
      %p161 = por %p159, %p160
      %p162 = scmp.ne.s32.totalorder %s153, %s154
      %p163 = scmp.eq.s32.totalorder %s28, 0
      %p164 = por %p162, %p163
      %p165 = scmp.ne.s32.totalorder %s153, %s154
      %p166 = scmp.eq.s32.totalorder %s29, 1
      %p167 = por %p165, %p166
      %p169 = scmp.ne.s32.totalorder %s154, %s168
      %p170 = scmp.eq.s32.totalorder %s29, 0
      %p171 = por %p169, %p170
      %s173 = sadd.s32 %s172, 1
      %p176 = scmp.eq.s32.totalorder %s23, 1
      %p177 = scmp.ne.s32.totalorder %s172, %s174
      %p178 = scmp.eq.s32.totalorder %s23, 0
      %p179 = por %p177, %p178
      %p180 = scmp.ne.s32.totalorder %s172, %s174
      %p181 = scmp.eq.s32.totalorder %s28, 1
      %p182 = por %p180, %p181
      %p183 = scmp.ne.s32.totalorder %s174, %s175
      %p184 = scmp.eq.s32.totalorder %s28, 0
      %p185 = por %p183, %p184
      %p186 = scmp.ne.s32.totalorder %s174, %s175
      %p187 = scmp.eq.s32.totalorder %s29, 1
      %p188 = por %p186, %p187
      %p190 = scmp.ne.s32.totalorder %s175, %s189
      %p191 = scmp.eq.s32.totalorder %s29, 0
      %p192 = por %p190, %p191
      %s194 = sadd.s32 %s193, 1
      %p197 = scmp.eq.s32.totalorder %s23, 1
      %p198 = scmp.ne.s32.totalorder %s193, %s195
      %p199 = scmp.eq.s32.totalorder %s23, 0
      %p200 = por %p198, %p199
      %p201 = scmp.ne.s32.totalorder %s193, %s195
      %p202 = scmp.eq.s32.totalorder %s28, 1
      %p203 = por %p201, %p202
      %p204 = scmp.ne.s32.totalorder %s195, %s196
      %p205 = scmp.eq.s32.totalorder %s28, 0
      %p206 = por %p204, %p205
      %p207 = scmp.ne.s32.totalorder %s195, %s196
      %p208 = scmp.eq.s32.totalorder %s29, 1
      %p209 = por %p207, %p208
      %p211 = scmp.ne.s32.totalorder %s196, %s210
      %p212 = scmp.eq.s32.totalorder %s29, 0
      %p213 = por %p211, %p212
      %s215 = sadd.s32 %s214, 1
      %p218 = scmp.eq.s32.totalorder %s23, 1
      %p219 = scmp.ne.s32.totalorder %s214, %s216
      %p220 = scmp.eq.s32.totalorder %s23, 0
      %p221 = por %p219, %p220
      %p222 = scmp.ne.s32.totalorder %s214, %s216
      %p223 = scmp.eq.s32.totalorder %s28, 1
      %p224 = por %p222, %p223
      %p225 = scmp.ne.s32.totalorder %s216, %s217
      %p226 = scmp.eq.s32.totalorder %s28, 0
      %p227 = por %p225, %p226
      %p228 = scmp.ne.s32.totalorder %s216, %s217
      %p229 = scmp.eq.s32.totalorder %s29, 1
      %p230 = por %p228, %p229
      %p232 = scmp.ne.s32.totalorder %s217, %s231
      %p233 = scmp.eq.s32.totalorder %s29, 0
      %p234 = por %p232, %p233
      %s236 = sadd.s32 %s235, 1
      %p239 = scmp.eq.s32.totalorder %s23, 1
      %p240 = scmp.ne.s32.totalorder %s235, %s237
      %p241 = scmp.eq.s32.totalorder %s23, 0
      %p242 = por %p240, %p241
      %p243 = scmp.ne.s32.totalorder %s235, %s237
      %p244 = scmp.eq.s32.totalorder %s28, 1
      %p245 = por %p243, %p244
      %p246 = scmp.ne.s32.totalorder %s237, %s238
      %p247 = scmp.eq.s32.totalorder %s28, 0
      %p248 = por %p246, %p247
      %p249 = scmp.ne.s32.totalorder %s237, %s238
      %p250 = scmp.eq.s32.totalorder %s29, 1
      %p251 = por %p249, %p250
      %p253 = scmp.ne.s32.totalorder %s238, %s252
      %p254 = scmp.eq.s32.totalorder %s29, 0
      %p255 = por %p253, %p254
      %s257 = sadd.s32 %s256, 1
      %p260 = scmp.eq.s32.totalorder %s23, 1
      %p261 = scmp.ne.s32.totalorder %s256, %s258
      %p262 = scmp.eq.s32.totalorder %s23, 0
      %p263 = por %p261, %p262
      %p264 = scmp.ne.s32.totalorder %s256, %s258
      %p265 = scmp.eq.s32.totalorder %s28, 1
      %p266 = por %p264, %p265
      %p267 = scmp.ne.s32.totalorder %s258, %s259
      %p268 = scmp.eq.s32.totalorder %s28, 0
      %p269 = por %p267, %p268
      %p270 = scmp.ne.s32.totalorder %s258, %s259
      %p271 = scmp.eq.s32.totalorder %s29, 1
      %p272 = por %p270, %p271
      %p274 = scmp.ne.s32.totalorder %s259, %s273
      %p275 = scmp.eq.s32.totalorder %s29, 0
      %p276 = por %p274, %p275
      %s277 = ssub.s32 %s23, %s30
      %p278 = scmp.eq.s32.totalorder %s277, 0
      %s280 = sadd.s32 %s279, 1
      %s281 = scalar_select %p278, %s279, %s280
      %p284 = pneg %p278
      %p285 = scmp.eq.s32.totalorder %s23, 1
      %p286 = por %p284, %p285
      %p287 = scmp.ne.s32.totalorder %s279, %s282
      %p288 = scmp.eq.s32.totalorder %s23, 0
      %p289 = por %p287, %p288
      %p290 = scmp.ne.s32.totalorder %s279, %s282
      %p291 = scmp.eq.s32.totalorder %s28, 1
      %p292 = por %p290, %p291
      %p293 = scmp.ne.s32.totalorder %s282, %s283
      %p294 = scmp.eq.s32.totalorder %s28, 0
      %p295 = por %p293, %p294
      %p296 = scmp.ne.s32.totalorder %s282, %s283
      %p297 = scmp.eq.s32.totalorder %s29, 1
      %p298 = por %p296, %p297
      %p300 = scmp.ne.s32.totalorder %s283, %s299
      %p301 = scmp.eq.s32.totalorder %s29, 0
      %p302 = por %p300, %p301
      %s303 = ssub.s32 %s23, %s30
      %p304 = scmp.eq.s32.totalorder %s303, 0
      %s306 = sadd.s32 %s305, 1
      %s307 = scalar_select %p304, %s305, %s306
      %p310 = pneg %p304
      %p311 = scmp.eq.s32.totalorder %s23, 1
      %p312 = por %p310, %p311
      %p313 = scmp.ne.s32.totalorder %s305, %s308
      %p314 = scmp.eq.s32.totalorder %s23, 0
      %p315 = por %p313, %p314
      %p316 = scmp.ne.s32.totalorder %s305, %s308
      %p317 = scmp.eq.s32.totalorder %s28, 1
      %p318 = por %p316, %p317
      %p319 = scmp.ne.s32.totalorder %s308, %s309
      %p320 = scmp.eq.s32.totalorder %s28, 0
      %p321 = por %p319, %p320
      %p322 = scmp.ne.s32.totalorder %s308, %s309
      %p323 = scmp.eq.s32.totalorder %s29, 1
      %p324 = por %p322, %p323
      %p326 = scmp.ne.s32.totalorder %s309, %s325
      %p327 = scmp.eq.s32.totalorder %s29, 0
      %p328 = por %p326, %p327
      %p329 = scmp.le.s32.totalorder 1, %s23
      %p330 = scmp.lt.s32.totalorder %s23, 3
      %p331 = pnand %p329, %p330
      %p332 = pneg %p331
      // Predicated region
      $region9: #{tpu_custom_call.1} parent=5 // pred_check
        _
      $region10: #{tpu_custom_call.1} parent=5 // pred_check_branch
        %334 = sbr.rel (%p331) target = $region12
      $region11: #{tpu_custom_call.1} parent=5 // pred_region
        %s335 = ssub.s32 %s23, 1
        // Predicated region
        $region13: #{tpu_custom_call.1} parent=11 // pred_check
          %p336 = pneg %p44
        $region14: #{tpu_custom_call.1} parent=11 // pred_check_branch
          %338 = sbr.rel (%p336) target = $region16
        $region15: #{tpu_custom_call.1} parent=11 // pred_region
          _
        $region16: #{tpu_custom_call.1} parent=11 // pred_fallthru
          _
        // Predicated region
        $region17: #{tpu_custom_call.1} parent=11 // pred_check
          %p339 = pneg %p143
        $region18: #{tpu_custom_call.1} parent=11 // pred_check_branch
          %341 = sbr.rel (%p339) target = $region20
        $region19: #{tpu_custom_call.1} parent=11 // pred_region
          _
        $region20: #{tpu_custom_call.1} parent=11 // pred_fallthru
          _
        // Predicated region
        $region21: #{tpu_custom_call.1} parent=11 // pred_check
          %p342 = pneg %p164
        $region22: #{tpu_custom_call.1} parent=11 // pred_check_branch
          %344 = sbr.rel (%p342) target = $region24
        $region23: #{tpu_custom_call.1} parent=11 // pred_region
          _
        $region24: #{tpu_custom_call.1} parent=11 // pred_fallthru
          _
        // Predicated region
        $region25: #{tpu_custom_call.1} parent=11 // pred_check
          %p345 = pneg %p185
        $region26: #{tpu_custom_call.1} parent=11 // pred_check_branch
          %347 = sbr.rel (%p345) target = $region28
        $region27: #{tpu_custom_call.1} parent=11 // pred_region
          _
        $region28: #{tpu_custom_call.1} parent=11 // pred_fallthru
          _
        // Predicated region
        $region29: #{tpu_custom_call.1} parent=11 // pred_check
          %p348 = pneg %p206
        $region30: #{tpu_custom_call.1} parent=11 // pred_check_branch
          %350 = sbr.rel (%p348) target = $region32
        $region31: #{tpu_custom_call.1} parent=11 // pred_region
          _
        $region32: #{tpu_custom_call.1} parent=11 // pred_fallthru
          _
        // Predicated region
        $region33: #{tpu_custom_call.1} parent=11 // pred_check
          %p351 = pneg %p227
        $region34: #{tpu_custom_call.1} parent=11 // pred_check_branch
          %353 = sbr.rel (%p351) target = $region36
        $region35: #{tpu_custom_call.1} parent=11 // pred_region
          _
        $region36: #{tpu_custom_call.1} parent=11 // pred_fallthru
          _
        // Predicated region
        $region37: #{tpu_custom_call.1} parent=11 // pred_check
          %p354 = pneg %p248
        $region38: #{tpu_custom_call.1} parent=11 // pred_check_branch
          %356 = sbr.rel (%p354) target = $region40
        $region39: #{tpu_custom_call.1} parent=11 // pred_region
          _
        $region40: #{tpu_custom_call.1} parent=11 // pred_fallthru
          _
        // Predicated region
        $region41: #{tpu_custom_call.1} parent=11 // pred_check
          %p357 = pneg %p269
        $region42: #{tpu_custom_call.1} parent=11 // pred_check_branch
          %359 = sbr.rel (%p357) target = $region44
        $region43: #{tpu_custom_call.1} parent=11 // pred_region
          _
        $region44: #{tpu_custom_call.1} parent=11 // pred_fallthru
          _
      $region12: #{tpu_custom_call.1} parent=5 // pred_fallthru
        _
      %p360 = scmp.lt.s32.totalorder %s23, 2
      // Predicated region
      $region45: #{tpu_custom_call.1} parent=5 // pred_check
        %p361 = pneg %p360
      $region46: #{tpu_custom_call.1} parent=5 // pred_check_branch
        %363 = sbr.rel (%p361) target = $region48
      $region47: #{tpu_custom_call.1} parent=5 // pred_region
        // Predicated region
        $region49: #{tpu_custom_call.1} parent=47 // pred_check
          %p364 = pneg %p64
        $region50: #{tpu_custom_call.1} parent=47 // pred_check_branch
          %366 = sbr.rel (%p364) target = $region52
        $region51: #{tpu_custom_call.1} parent=47 // pred_region
          %s367 = smul.u32 16, %s23
          %p368 = scmp.lt.s32.totalorder %s367, 31
          %s369 = scalar_select %p368, %s367, 31
          %s370 = smul.addr %s369, 8
          %s371 = scalar_lea.vmem %s1, %s370
          %s372 = smul.u32 16, %s23
        $region52: #{tpu_custom_call.1} parent=47 // pred_fallthru
          _
        // Predicated region
        $region53: #{tpu_custom_call.1} parent=47 // pred_check
          %p373 = pneg %p90
        $region54: #{tpu_custom_call.1} parent=47 // pred_check_branch
          %375 = sbr.rel (%p373) target = $region56
        $region55: #{tpu_custom_call.1} parent=47 // pred_region
          %s376 = smul.u32 16, %s23
          %p377 = scmp.lt.s32.totalorder %s376, 31
          %s378 = scalar_select %p377, %s376, 31
          %s379 = smul.addr %s378, 8
          %s380 = scalar_lea.vmem %s2, %s379
          %s381 = smul.u32 16, %s23
        $region56: #{tpu_custom_call.1} parent=47 // pred_fallthru
          _
        // Predicated region
        $region57: #{tpu_custom_call.1} parent=47 // pred_check
          %p382 = pneg %p116
        $region58: #{tpu_custom_call.1} parent=47 // pred_check_branch
          %384 = sbr.rel (%p382) target = $region60
        $region59: #{tpu_custom_call.1} parent=47 // pred_region
          %s385 = smul.u32 16, %s23
          %p386 = scmp.lt.s32.totalorder %s385, 31
          %s387 = scalar_select %p386, %s385, 31
          %s388 = smul.addr %s387, 8
          %s389 = scalar_lea.vmem %s3, %s388
          %s390 = smul.u32 16, %s23
        $region60: #{tpu_custom_call.1} parent=47 // pred_fallthru
          _
      $region48: #{tpu_custom_call.1} parent=5 // pred_fallthru
        _
      %p391 = scmp.le.s32.totalorder 1, %s23
      %p392 = scmp.lt.s32.totalorder %s23, 3
      %p393 = pnand %p391, %p392
      %p394 = pneg %p393
      // Predicated region
      $region61: #{tpu_custom_call.1} parent=5 // pred_check
        _
      $region62: #{tpu_custom_call.1} parent=5 // pred_check_branch
        %396 = sbr.rel (%p393) target = $region64
      $region63: #{tpu_custom_call.1} parent=5 // pred_region
        %s397 = ssub.s32 %s23, 1
        %p398 = pneg %p44
        %p399 = pneg %p41
        %s400 = smul.u32 16, %s28
        %p401 = scmp.lt.s32.totalorder %s400, 31
        %s402 = scalar_select %p401, %s400, 31
        %s403 = smul.addr %s402, 8
        %s404 = scalar_lea.vmem %s1, %s403
        %p405 = pneg %p70
        %p406 = pneg %p67
        %s407 = smul.u32 16, %s28
        %p408 = scmp.lt.s32.totalorder %s407, 31
        %s409 = scalar_select %p408, %s407, 31
        %s410 = smul.addr %s409, 8
        %s411 = scalar_lea.vmem %s2, %s410
        %p412 = pneg %p96
        %p413 = pneg %p93
        %s414 = smul.u32 16, %s28
        %p415 = scmp.lt.s32.totalorder %s414, 31
        %s416 = scalar_select %p415, %s414, 31
        %s417 = smul.addr %s416, 8
        %s418 = scalar_lea.vmem %s3, %s417
        %p419 = pneg %p122
        %p420 = pneg %p119
        %p421 = pneg %p143
        %p422 = pneg %p140
        %p423 = pneg %p164
        %p424 = pneg %p161
        %p425 = pneg %p185
        %p426 = pneg %p182
        %p427 = pneg %p206
        %p428 = pneg %p203
        %p429 = pneg %p227
        %p430 = pneg %p224
        %p431 = pneg %p248
        %p432 = pneg %p245
        %p433 = pneg %p269
        %p434 = pneg %p266
        %p435 = pneg %p295
        %p436 = pneg %p292
        %s437 = smul.u32 16, %s28
        %p438 = scmp.lt.s32.totalorder %s437, 31
        %s439 = scalar_select %p438, %s437, 31
        %s440 = smul.addr %s439, 8
        %s441 = scalar_lea.vmem %s11, %s440
        %p442 = pneg %p321
        %p443 = pneg %p318
        %s444 = sand.u32 %s308, 1
        %s445 = scalar_lea.sflag [#allocation4], %s444
        %s446 = sand.u32 %s308, 1
        %s447 = scalar_lea.vmem [#allocation3], %s446
        %s448 = smul.u32 16, %s28
        %p449 = scmp.lt.s32.totalorder %s448, 31
        %s450 = scalar_select %p449, %s448, 31
        %s451 = smul.addr %s450, 8
        %s452 = scalar_lea.vmem %s1, %s451
        %s453 = smul.u32 16, %s28
        %s454 = smul.u32 16, %s28
        %p455 = scmp.lt.s32.totalorder %s454, 31
        %s456 = scalar_select %p455, %s454, 31
        %s457 = smul.addr %s456, 8
        %s458 = scalar_lea.vmem %s2, %s457
        %s459 = smul.u32 16, %s28
        %s460 = smul.u32 16, %s28
        %p461 = scmp.lt.s32.totalorder %s460, 31
        %s462 = scalar_select %p461, %s460, 31
        %s463 = smul.addr %s462, 8
        %s464 = scalar_lea.vmem %s3, %s463
        %s465 = smul.u32 16, %s28
        %s466 = smul.u32 16, %s28
        %p467 = scmp.lt.s32.totalorder %s466, 31
        %s468 = scalar_select %p467, %s466, 31
        %s469 = smul.addr %s468, 8
        %s470 = scalar_lea.vmem %s11, %s469
        %s471 = smul.u32 16, %s28
        %s472 = sld [smem:[#allocation2]]
        %v473 = vld [vmem:[%s452] sm:$0xff]
        %v474 = vld [vmem:[%s452 + $0x8] sm:$0xff]
        %v475 = vld [vmem:[%s452 + $0x10] sm:$0xff]
        %v476 = vld [vmem:[%s452 + $0x18] sm:$0xff]
        %v477 = vld [vmem:[%s452 + $0x20] sm:$0xff]
        %v478 = vld [vmem:[%s452 + $0x28] sm:$0xff]
        %v479 = vld [vmem:[%s452 + $0x30] sm:$0xff]
        %v480 = vld [vmem:[%s452 + $0x38] sm:$0xff]
        %v481 = vld [vmem:[%s452 + $0x40] sm:$0xff]
        %v482 = vld [vmem:[%s452 + $0x48] sm:$0xff]
        %v483 = vld [vmem:[%s452 + $0x50] sm:$0xff]
        %v484 = vld [vmem:[%s452 + $0x58] sm:$0xff]
        %v485 = vld [vmem:[%s452 + $0x60] sm:$0xff]
        %v486 = vld [vmem:[%s452 + $0x68] sm:$0xff]
        %v487 = vld [vmem:[%s452 + $0x70] sm:$0xff]
        %v488 = vld [vmem:[%s452 + $0x78] sm:$0xff]
        %v489 = vld [vmem:[%s458] sm:$0xff]
        %v490 = vld [vmem:[%s458 + $0x8] sm:$0xff]
        %v491 = vld [vmem:[%s458 + $0x10] sm:$0xff]
        %v492 = vld [vmem:[%s458 + $0x18] sm:$0xff]
        %v493 = vld [vmem:[%s458 + $0x20] sm:$0xff]
        %v494 = vld [vmem:[%s458 + $0x28] sm:$0xff]
        %v495 = vld [vmem:[%s458 + $0x30] sm:$0xff]
        %v496 = vld [vmem:[%s458 + $0x38] sm:$0xff]
        %v497 = vld [vmem:[%s458 + $0x40] sm:$0xff]
        %v498 = vld [vmem:[%s458 + $0x48] sm:$0xff]
        %v499 = vld [vmem:[%s458 + $0x50] sm:$0xff]
        %v500 = vld [vmem:[%s458 + $0x58] sm:$0xff]
        %v501 = vld [vmem:[%s458 + $0x60] sm:$0xff]
        %v502 = vld [vmem:[%s458 + $0x68] sm:$0xff]
        %v503 = vld [vmem:[%s458 + $0x70] sm:$0xff]
        %v504 = vld [vmem:[%s458 + $0x78] sm:$0xff]
        %v505 = vld [vmem:[%s464] sm:$0xff]
        %v506 = vld [vmem:[%s464 + $0x8] sm:$0xff]
        %v507 = vld [vmem:[%s464 + $0x10] sm:$0xff]
        %v508 = vld [vmem:[%s464 + $0x18] sm:$0xff]
        %v509 = vld [vmem:[%s464 + $0x20] sm:$0xff]
        %v510 = vld [vmem:[%s464 + $0x28] sm:$0xff]
        %v511 = vld [vmem:[%s464 + $0x30] sm:$0xff]
        %v512 = vld [vmem:[%s464 + $0x38] sm:$0xff]
        %v513 = vld [vmem:[%s464 + $0x40] sm:$0xff]
        %v514 = vld [vmem:[%s464 + $0x48] sm:$0xff]
        %v515 = vld [vmem:[%s464 + $0x50] sm:$0xff]
        %v516 = vld [vmem:[%s464 + $0x58] sm:$0xff]
        %v517 = vld [vmem:[%s464 + $0x60] sm:$0xff]
        %v518 = vld [vmem:[%s464 + $0x68] sm:$0xff]
        %v519 = vld [vmem:[%s464 + $0x70] sm:$0xff]
        %v520 = vld [vmem:[%s464 + $0x78] sm:$0xff]
        %v521 = vld [vmem:[%s4] sm:$0xff]
        %v522 = vld [vmem:[%s4 + $0x8] sm:$0xff]
        %v523 = vld [vmem:[%s6] sm:$0x7f]
        %vm524 = vcmask 56320
        %v526 = vsel %vm524, %v489, 0
        %v529 = vsel %vm524, %v490, 0
        %v532 = vsel %vm524, %v491, 0
        %v535 = vsel %vm524, %v492, 0
        %v538 = vsel %vm524, %v493, 0
        %v541 = vsel %vm524, %v494, 0
        %v544 = vsel %vm524, %v495, 0
        %v547 = vsel %vm524, %v496, 0
        %v550 = vsel %vm524, %v497, 0
        %v553 = vsel %vm524, %v498, 0
        %v556 = vsel %vm524, %v499, 0
        %v559 = vsel %vm524, %v500, 0
        %v562 = vsel %vm524, %v501, 0
        %v565 = vsel %vm524, %v502, 0
        %v568 = vsel %vm524, %v503, 0
        %v571 = vsel %vm524, %v504, 0
        %vm573 = vcmask 1046528
        %v575 = vsel %vm573, %v523, 0
        %577 = vmatprep.subr.mxu0 0.0
        %578 = vmatpush1.msra.mxu0 0.0
        %579 = vmatprep.subr.mxu0 0.0
        %580 = vmatpush1.msra.mxu0 0.0
        %581 = vmatprep.subr.mxu0 0.0
        %582 = vmatpush1.msra.mxu0 0.0
        %583 = vmatprep.subr.mxu0 0.0
        %584 = vmatpush1.msra.mxu0 0.0
        %585 = vmatprep.subr.mxu0 0.0
        %586 = vmatpush1.msra.mxu0 0.0
        %587 = vmatprep.subr.mxu0 0.0
        %588 = vmatpush1.msra.mxu0 0.0
        %589 = vmatprep.subr.mxu0 0.0
        %590 = vmatpush1.msra.mxu0 0.0
        %591 = vmatprep.subr.mxu0 0.0
        %592 = vmatpush1.msra.mxu0 0.0
        %593 = vmatprep.subr.mxu0 0.0
        %594 = vmatpush1.msra.mxu0 0.0
        %595 = vmatprep.subr.mxu0 0.0
        %596 = vmatpush1.msra.mxu0 0.0
        %597 = vmatprep.subr.mxu0 0.0
        %598 = vmatpush1.msra.mxu0 0.0
        %599 = vmatprep.subr.mxu0 0.0
        %600 = vmatpush1.msra.mxu0 0.0
        %601 = vmatprep.subr.mxu0 0.0
        %602 = vmatpush1.msra.mxu0 0.0
        %603 = vmatprep.subr.mxu0 0.0
        %604 = vmatpush1.msra.mxu0 0.0
        %605 = vmatprep.subr.mxu0 0.0
        %606 = vmatpush1.msra.mxu0 0.0
        %607 = vmatprep.subr.mxu0 0.0
        %608 = vmatpush1.msra.mxu0 %v575
        %609 = vmatprep.subr.mxu0 0.0
        %610 = vmatpush2.msra.mxu0 0.0
        %611 = vmatprep.subr.mxu0 0.0
        %612 = vmatpush2.msra.mxu0 0.0
        %613 = vmatprep.subr.mxu0 0.0
        %614 = vmatpush2.msra.mxu0 0.0
        %615 = vmatprep.subr.mxu0 0.0
        %616 = vmatpush2.msra.mxu0 0.0
        %617 = vmatprep.subr.mxu0 0.0
        %618 = vmatpush2.msra.mxu0 0.0
        %619 = vmatprep.subr.mxu0 0.0
        %620 = vmatpush2.msra.mxu0 0.0
        %621 = vmatprep.subr.mxu0 0.0
        %622 = vmatpush2.msra.mxu0 0.0
        %623 = vmatprep.subr.mxu0 0.0
        %624 = vmatpush2.msra.mxu0 0.0
        %625 = vmatprep.subr.mxu0 0.0
        %626 = vmatpush2.msra.mxu0 0.0
        %627 = vmatprep.subr.mxu0 0.0
        %628 = vmatpush2.msra.mxu0 0.0
        %629 = vmatprep.subr.mxu0 0.0
        %630 = vmatpush2.msra.mxu0 0.0
        %631 = vmatprep.subr.mxu0 0.0
        %632 = vmatpush2.msra.mxu0 0.0
        %633 = vmatprep.subr.mxu0 0.0
        %634 = vmatpush2.msra.mxu0 0.0
        %635 = vmatprep.subr.mxu0 0.0
        %636 = vmatpush2.msra.mxu0 0.0
        %637 = vmatprep.subr.mxu0 0.0
        %638 = vmatpush2.msra.mxu0 0.0
        %639 = vmatprep.subr.mxu0 0.0
        %640 = vmatpush2.msra.mxu0 0.0
        %641 = vmatprep.mubr.f32.mxu0 0.0
        %642 = vmatmul.mubr.f32.gmra.mxu0 %v526
        %v643 = vpop.f32.mrf.mxu0
        %v644 = vadd.f32 0.0, %v643
        %v645 = vpop.f32.mrf.mxu0
        %646 = vmatprep.mubr.f32.mxu0 0.0
        %647 = vmatmul.mubr.f32.gmra.mxu0 %v529
        %v648 = vpop.f32.mrf.mxu0
        %v649 = vadd.f32 0.0, %v648
        %v650 = vpop.f32.mrf.mxu0
        %651 = vmatprep.mubr.f32.mxu0 0.0
        %652 = vmatmul.mubr.f32.gmra.mxu0 %v532
        %v653 = vpop.f32.mrf.mxu0
        %v654 = vadd.f32 0.0, %v653
        %v655 = vpop.f32.mrf.mxu0
        %656 = vmatprep.mubr.f32.mxu0 0.0
        %657 = vmatmul.mubr.f32.gmra.mxu0 %v535
        %v658 = vpop.f32.mrf.mxu0
        %v659 = vadd.f32 0.0, %v658
        %v660 = vpop.f32.mrf.mxu0
        %661 = vmatprep.mubr.f32.mxu0 0.0
        %662 = vmatmul.mubr.f32.gmra.mxu0 %v538
        %v663 = vpop.f32.mrf.mxu0
        %v664 = vadd.f32 0.0, %v663
        %v665 = vpop.f32.mrf.mxu0
        %666 = vmatprep.mubr.f32.mxu0 0.0
        %667 = vmatmul.mubr.f32.gmra.mxu0 %v541
        %v668 = vpop.f32.mrf.mxu0
        %v669 = vadd.f32 0.0, %v668
        %v670 = vpop.f32.mrf.mxu0
        %671 = vmatprep.mubr.f32.mxu0 0.0
        %672 = vmatmul.mubr.f32.gmra.mxu0 %v544
        %v673 = vpop.f32.mrf.mxu0
        %v674 = vadd.f32 0.0, %v673
        %v675 = vpop.f32.mrf.mxu0
        %676 = vmatprep.mubr.f32.mxu0 0.0
        %677 = vmatmul.mubr.f32.gmra.mxu0 %v547
        %v678 = vpop.f32.mrf.mxu0
        %v679 = vadd.f32 0.0, %v678
        %v680 = vpop.f32.mrf.mxu0
        %681 = vmatprep.mubr.f32.mxu0 0.0
        %682 = vmatmul.mubr.f32.gmra.mxu0 %v550
        %v683 = vpop.f32.mrf.mxu0
        %v684 = vadd.f32 0.0, %v683
        %v685 = vpop.f32.mrf.mxu0
        %686 = vmatprep.mubr.f32.mxu0 0.0
        %687 = vmatmul.mubr.f32.gmra.mxu0 %v553
        %v688 = vpop.f32.mrf.mxu0
        %v689 = vadd.f32 0.0, %v688
        %v690 = vpop.f32.mrf.mxu0
        %691 = vmatprep.mubr.f32.mxu0 0.0
        %692 = vmatmul.mubr.f32.gmra.mxu0 %v556
        %v693 = vpop.f32.mrf.mxu0
        %v694 = vadd.f32 0.0, %v693
        %v695 = vpop.f32.mrf.mxu0
        %696 = vmatprep.mubr.f32.mxu0 0.0
        %697 = vmatmul.mubr.f32.gmra.mxu0 %v559
        %v698 = vpop.f32.mrf.mxu0
        %v699 = vadd.f32 0.0, %v698
        %v700 = vpop.f32.mrf.mxu0
        %701 = vmatprep.mubr.f32.mxu0 0.0
        %702 = vmatmul.mubr.f32.gmra.mxu0 %v562
        %v703 = vpop.f32.mrf.mxu0
        %v704 = vadd.f32 0.0, %v703
        %v705 = vpop.f32.mrf.mxu0
        %706 = vmatprep.mubr.f32.mxu0 0.0
        %707 = vmatmul.mubr.f32.gmra.mxu0 %v565
        %v708 = vpop.f32.mrf.mxu0
        %v709 = vadd.f32 0.0, %v708
        %v710 = vpop.f32.mrf.mxu0
        %711 = vmatprep.mubr.f32.mxu0 0.0
        %712 = vmatmul.mubr.f32.gmra.mxu0 %v568
        %v713 = vpop.f32.mrf.mxu0
        %v714 = vadd.f32 0.0, %v713
        %v715 = vpop.f32.mrf.mxu0
        %716 = vmatprep.mubr.f32.mxu0 0.0
        %717 = vmatmul.mubr.f32.gmra.mxu0 %v571
        %v718 = vpop.f32.mrf.mxu0
        %v719 = vadd.f32 0.0, %v718
        %v720 = vpop.f32.mrf.mxu0
        %721 = vdwg.mxu0
        %vm722 = vcmask 130048
        %v724 = vsel %vm722, %v473, 0
        %v727 = vsel %vm722, %v474, 0
        %v730 = vsel %vm722, %v475, 0
        %v733 = vsel %vm722, %v476, 0
        %v736 = vsel %vm722, %v477, 0
        %v739 = vsel %vm722, %v478, 0
        %v742 = vsel %vm722, %v479, 0
        %v745 = vsel %vm722, %v480, 0
        %v748 = vsel %vm722, %v481, 0
        %v751 = vsel %vm722, %v482, 0
        %v754 = vsel %vm722, %v483, 0
        %v757 = vsel %vm722, %v484, 0
        %v760 = vsel %vm722, %v485, 0
        %v763 = vsel %vm722, %v486, 0
        %v766 = vsel %vm722, %v487, 0
        %v769 = vsel %vm722, %v488, 0
        %771 = vmatprep.subr.mxu0 0.0
        %772 = vmatpush1.msra.mxu0 0.0
        %773 = vmatprep.subr.mxu0 0.0
        %774 = vmatpush1.msra.mxu0 0.0
        %775 = vmatprep.subr.mxu0 0.0
        %776 = vmatpush1.msra.mxu0 0.0
        %777 = vmatprep.subr.mxu0 0.0
        %778 = vmatpush1.msra.mxu0 0.0
        %779 = vmatprep.subr.mxu0 0.0
        %780 = vmatpush1.msra.mxu0 0.0
        %781 = vmatprep.subr.mxu0 0.0
        %782 = vmatpush1.msra.mxu0 0.0
        %783 = vmatprep.subr.mxu0 0.0
        %784 = vmatpush1.msra.mxu0 0.0
        %785 = vmatprep.subr.mxu0 0.0
        %786 = vmatpush1.msra.mxu0 0.0
        %787 = vmatprep.subr.mxu0 0.0
        %788 = vmatpush1.msra.mxu0 0.0
        %789 = vmatprep.subr.mxu0 0.0
        %790 = vmatpush1.msra.mxu0 0.0
        %791 = vmatprep.subr.mxu0 0.0
        %792 = vmatpush1.msra.mxu0 0.0
        %793 = vmatprep.subr.mxu0 0.0
        %794 = vmatpush1.msra.mxu0 0.0
        %795 = vmatprep.subr.mxu0 0.0
        %796 = vmatpush1.msra.mxu0 0.0
        %797 = vmatprep.subr.mxu0 0.0
        %798 = vmatpush1.msra.mxu0 0.0
        %799 = vmatprep.subr.mxu0 0.0
        %800 = vmatpush1.msra.mxu0 %v522
        %801 = vmatprep.subr.mxu0 0.0
        %802 = vmatpush1.msra.mxu0 %v521
        %803 = vmatprep.subr.mxu0 0.0
        %804 = vmatpush2.msra.mxu0 0.0
        %805 = vmatprep.subr.mxu0 0.0
        %806 = vmatpush2.msra.mxu0 0.0
        %807 = vmatprep.subr.mxu0 0.0
        %808 = vmatpush2.msra.mxu0 0.0
        %809 = vmatprep.subr.mxu0 0.0
        %810 = vmatpush2.msra.mxu0 0.0
        %811 = vmatprep.subr.mxu0 0.0
        %812 = vmatpush2.msra.mxu0 0.0
        %813 = vmatprep.subr.mxu0 0.0
        %814 = vmatpush2.msra.mxu0 0.0
        %815 = vmatprep.subr.mxu0 0.0
        %816 = vmatpush2.msra.mxu0 0.0
        %817 = vmatprep.subr.mxu0 0.0
        %818 = vmatpush2.msra.mxu0 0.0
        %819 = vmatprep.subr.mxu0 0.0
        %820 = vmatpush2.msra.mxu0 0.0
        %821 = vmatprep.subr.mxu0 0.0
        %822 = vmatpush2.msra.mxu0 0.0
        %823 = vmatprep.subr.mxu0 0.0
        %824 = vmatpush2.msra.mxu0 0.0
        %825 = vmatprep.subr.mxu0 0.0
        %826 = vmatpush2.msra.mxu0 0.0
        %827 = vmatprep.subr.mxu0 0.0
        %828 = vmatpush2.msra.mxu0 0.0
        %829 = vmatprep.subr.mxu0 0.0
        %830 = vmatpush2.msra.mxu0 0.0
        %831 = vmatprep.subr.mxu0 0.0
        %832 = vmatpush2.msra.mxu0 0.0
        %833 = vmatprep.subr.mxu0 0.0
        %834 = vmatpush2.msra.mxu0 0.0
        %835 = vmatprep.mubr.f32.mxu0 0.0
        %836 = vmatmul.mubr.f32.gmra.mxu0 %v724
        %v837 = vpop.f32.mrf.mxu0
        %v838 = vadd.f32 %v644, %v837
        %v839 = vpop.f32.mrf.mxu0
        %840 = vmatprep.mubr.f32.mxu0 0.0
        %841 = vmatmul.mubr.f32.gmra.mxu0 %v727
        %v842 = vpop.f32.mrf.mxu0
        %v843 = vadd.f32 %v649, %v842
        %v844 = vpop.f32.mrf.mxu0
        %845 = vmatprep.mubr.f32.mxu0 0.0
        %846 = vmatmul.mubr.f32.gmra.mxu0 %v730
        %v847 = vpop.f32.mrf.mxu0
        %v848 = vadd.f32 %v654, %v847
        %v849 = vpop.f32.mrf.mxu0
        %850 = vmatprep.mubr.f32.mxu0 0.0
        %851 = vmatmul.mubr.f32.gmra.mxu0 %v733
        %v852 = vpop.f32.mrf.mxu0
        %v853 = vadd.f32 %v659, %v852
        %v854 = vpop.f32.mrf.mxu0
        %855 = vmatprep.mubr.f32.mxu0 0.0
        %856 = vmatmul.mubr.f32.gmra.mxu0 %v736
        %v857 = vpop.f32.mrf.mxu0
        %v858 = vadd.f32 %v664, %v857
        %v859 = vpop.f32.mrf.mxu0
        %860 = vmatprep.mubr.f32.mxu0 0.0
        %861 = vmatmul.mubr.f32.gmra.mxu0 %v739
        %v862 = vpop.f32.mrf.mxu0
        %v863 = vadd.f32 %v669, %v862
        %v864 = vpop.f32.mrf.mxu0
        %865 = vmatprep.mubr.f32.mxu0 0.0
        %866 = vmatmul.mubr.f32.gmra.mxu0 %v742
        %v867 = vpop.f32.mrf.mxu0
        %v868 = vadd.f32 %v674, %v867
        %v869 = vpop.f32.mrf.mxu0
        %870 = vmatprep.mubr.f32.mxu0 0.0
        %871 = vmatmul.mubr.f32.gmra.mxu0 %v745
        %v872 = vpop.f32.mrf.mxu0
        %v873 = vadd.f32 %v679, %v872
        %v874 = vpop.f32.mrf.mxu0
        %875 = vmatprep.mubr.f32.mxu0 0.0
        %876 = vmatmul.mubr.f32.gmra.mxu0 %v748
        %v877 = vpop.f32.mrf.mxu0
        %v878 = vadd.f32 %v684, %v877
        %v879 = vpop.f32.mrf.mxu0
        %880 = vmatprep.mubr.f32.mxu0 0.0
        %881 = vmatmul.mubr.f32.gmra.mxu0 %v751
        %v882 = vpop.f32.mrf.mxu0
        %v883 = vadd.f32 %v689, %v882
        %v884 = vpop.f32.mrf.mxu0
        %885 = vmatprep.mubr.f32.mxu0 0.0
        %886 = vmatmul.mubr.f32.gmra.mxu0 %v754
        %v887 = vpop.f32.mrf.mxu0
        %v888 = vadd.f32 %v694, %v887
        %v889 = vpop.f32.mrf.mxu0
        %890 = vmatprep.mubr.f32.mxu0 0.0
        %891 = vmatmul.mubr.f32.gmra.mxu0 %v757
        %v892 = vpop.f32.mrf.mxu0
        %v893 = vadd.f32 %v699, %v892
        %v894 = vpop.f32.mrf.mxu0
        %895 = vmatprep.mubr.f32.mxu0 0.0
        %896 = vmatmul.mubr.f32.gmra.mxu0 %v760
        %v897 = vpop.f32.mrf.mxu0
        %v898 = vadd.f32 %v704, %v897
        %v899 = vpop.f32.mrf.mxu0
        %900 = vmatprep.mubr.f32.mxu0 0.0
        %901 = vmatmul.mubr.f32.gmra.mxu0 %v763
        %v902 = vpop.f32.mrf.mxu0
        %v903 = vadd.f32 %v709, %v902
        %v904 = vpop.f32.mrf.mxu0
        %905 = vmatprep.mubr.f32.mxu0 0.0
        %906 = vmatmul.mubr.f32.gmra.mxu0 %v766
        %v907 = vpop.f32.mrf.mxu0
        %v908 = vadd.f32 %v714, %v907
        %v909 = vpop.f32.mrf.mxu0
        %910 = vmatprep.mubr.f32.mxu0 0.0
        %911 = vmatmul.mubr.f32.gmra.mxu0 %v769
        %v912 = vpop.f32.mrf.mxu0
        %v913 = vadd.f32 %v719, %v912
        %v914 = vpop.f32.mrf.mxu0
        %915 = vdwg.mxu0
        %v916 = vld [vmem:[%s7] sm:$0x1]
        %v917 = vstv %s472
        %v918 = vmul.f32 %v917, %v916
        %v920 = vlaneseq
        %v921 = vshrl.u32 %v920, 7
        %v922 = vsub.s32 0, %v921
        %v923 = vrot.slane %v918, %v922
        %v925 = vadd.f32 %v838, %v923
        %v926 = vadd.f32 %v843, %v923
        %v927 = vadd.f32 %v848, %v923
        %v928 = vadd.f32 %v853, %v923
        %v929 = vadd.f32 %v858, %v923
        %v930 = vadd.f32 %v863, %v923
        %v931 = vadd.f32 %v868, %v923
        %v932 = vadd.f32 %v873, %v923
        %v933 = vadd.f32 %v878, %v923
        %v934 = vadd.f32 %v883, %v923
        %v935 = vadd.f32 %v888, %v923
        %v936 = vadd.f32 %v893, %v923
        %v937 = vadd.f32 %v898, %v923
        %v938 = vadd.f32 %v903, %v923
        %v939 = vadd.f32 %v908, %v923
        %v940 = vadd.f32 %v913, %v923
        %v941 = vld [vmem:[%s8] sm:$0x1]
        %v943 = vlaneseq
        %v944 = vshrl.u32 %v943, 7
        %v945 = vsub.s32 0, %v944
        %v946 = vrot.slane %v941, %v945
        %v948 = vadd.f32 %v925, %v946
        %v949 = vadd.f32 %v926, %v946
        %v950 = vadd.f32 %v927, %v946
        %v951 = vadd.f32 %v928, %v946
        %v952 = vadd.f32 %v929, %v946
        %v953 = vadd.f32 %v930, %v946
        %v954 = vadd.f32 %v931, %v946
        %v955 = vadd.f32 %v932, %v946
        %v956 = vadd.f32 %v933, %v946
        %v957 = vadd.f32 %v934, %v946
        %v958 = vadd.f32 %v935, %v946
        %v959 = vadd.f32 %v936, %v946
        %v960 = vadd.f32 %v937, %v946
        %v961 = vadd.f32 %v938, %v946
        %v962 = vadd.f32 %v939, %v946
        %v963 = vadd.f32 %v940, %v946
        %v964 = vtanh.pop %v948
        %v965 = vtanh.pop %v949
        %v966 = vtanh.pop %v950
        %v967 = vtanh.pop %v951
        %v968 = vtanh.pop %v952
        %v969 = vtanh.pop %v953
        %v970 = vtanh.pop %v954
        %v971 = vtanh.pop %v955
        %v972 = vtanh.pop %v956
        %v973 = vtanh.pop %v957
        %v974 = vtanh.pop %v958
        %v975 = vtanh.pop %v959
        %v976 = vtanh.pop %v960
        %v977 = vtanh.pop %v961
        %v978 = vtanh.pop %v962
        %v979 = vtanh.pop %v963
        %v980 = vld [vmem:[%s9] sm:$0xff]
        %v981 = vld [vmem:[%s9 + $0x8] sm:$0xff]
        %v982 = vld [vmem:[%s9 + $0x10] sm:$0xff]
        %v983 = vld [vmem:[%s9 + $0x18] sm:$0xff]
        %v984 = vld [vmem:[%s9 + $0x20] sm:$0xff]
        %v985 = vld [vmem:[%s9 + $0x28] sm:$0xff]
        %v986 = vld [vmem:[%s9 + $0x30] sm:$0xff]
        %v987 = vld [vmem:[%s9 + $0x38] sm:$0xff]
        %v988 = vld [vmem:[%s10] sm:$0x1]
        %v990 = vlaneseq
        %v991 = vshrl.u32 %v990, 7
        %v992 = vsub.s32 0, %v991
        %v993 = vrot.slane %v988, %v992
        %vm995 = vcmask 523264
        %v997 = vsel %vm995, %v964, 0
        %v1000 = vsel %vm995, %v965, 0
        %v1003 = vsel %vm995, %v966, 0
        %v1006 = vsel %vm995, %v967, 0
        %v1009 = vsel %vm995, %v968, 0
        %v1012 = vsel %vm995, %v969, 0
        %v1015 = vsel %vm995, %v970, 0
        %v1018 = vsel %vm995, %v971, 0
        %v1021 = vsel %vm995, %v972, 0
        %v1024 = vsel %vm995, %v973, 0
        %v1027 = vsel %vm995, %v974, 0
        %v1030 = vsel %vm995, %v975, 0
        %v1033 = vsel %vm995, %v976, 0
        %v1036 = vsel %vm995, %v977, 0
        %v1039 = vsel %vm995, %v978, 0
        %v1042 = vsel %vm995, %v979, 0
        %1044 = vmatprep.subr.mxu0 0.0
        %1045 = vmatpush1.msra.mxu0 0.0
        %1046 = vmatprep.subr.mxu0 0.0
        %1047 = vmatpush1.msra.mxu0 0.0
        %1048 = vmatprep.subr.mxu0 0.0
        %1049 = vmatpush1.msra.mxu0 0.0
        %1050 = vmatprep.subr.mxu0 0.0
        %1051 = vmatpush1.msra.mxu0 0.0
        %1052 = vmatprep.subr.mxu0 0.0
        %1053 = vmatpush1.msra.mxu0 0.0
        %1054 = vmatprep.subr.mxu0 0.0
        %1055 = vmatpush1.msra.mxu0 0.0
        %1056 = vmatprep.subr.mxu0 0.0
        %1057 = vmatpush1.msra.mxu0 0.0
        %1058 = vmatprep.subr.mxu0 0.0
        %1059 = vmatpush1.msra.mxu0 0.0
        %1060 = vmatprep.subr.mxu0 0.0
        %1061 = vmatpush1.msra.mxu0 %v987
        %1062 = vmatprep.subr.mxu0 0.0
        %1063 = vmatpush1.msra.mxu0 %v986
        %1064 = vmatprep.subr.mxu0 0.0
        %1065 = vmatpush1.msra.mxu0 %v985
        %1066 = vmatprep.subr.mxu0 0.0
        %1067 = vmatpush1.msra.mxu0 %v984
        %1068 = vmatprep.subr.mxu0 0.0
        %1069 = vmatpush1.msra.mxu0 %v983
        %1070 = vmatprep.subr.mxu0 0.0
        %1071 = vmatpush1.msra.mxu0 %v982
        %1072 = vmatprep.subr.mxu0 0.0
        %1073 = vmatpush1.msra.mxu0 %v981
        %1074 = vmatprep.subr.mxu0 0.0
        %1075 = vmatpush1.msra.mxu0 %v980
        %1076 = vmatprep.subr.mxu0 0.0
        %1077 = vmatpush2.msra.mxu0 0.0
        %1078 = vmatprep.subr.mxu0 0.0
        %1079 = vmatpush2.msra.mxu0 0.0
        %1080 = vmatprep.subr.mxu0 0.0
        %1081 = vmatpush2.msra.mxu0 0.0
        %1082 = vmatprep.subr.mxu0 0.0
        %1083 = vmatpush2.msra.mxu0 0.0
        %1084 = vmatprep.subr.mxu0 0.0
        %1085 = vmatpush2.msra.mxu0 0.0
        %1086 = vmatprep.subr.mxu0 0.0
        %1087 = vmatpush2.msra.mxu0 0.0
        %1088 = vmatprep.subr.mxu0 0.0
        %1089 = vmatpush2.msra.mxu0 0.0
        %1090 = vmatprep.subr.mxu0 0.0
        %1091 = vmatpush2.msra.mxu0 0.0
        %1092 = vmatprep.subr.mxu0 0.0
        %1093 = vmatpush2.msra.mxu0 0.0
        %1094 = vmatprep.subr.mxu0 0.0
        %1095 = vmatpush2.msra.mxu0 0.0
        %1096 = vmatprep.subr.mxu0 0.0
        %1097 = vmatpush2.msra.mxu0 0.0
        %1098 = vmatprep.subr.mxu0 0.0
        %1099 = vmatpush2.msra.mxu0 0.0
        %1100 = vmatprep.subr.mxu0 0.0
        %1101 = vmatpush2.msra.mxu0 0.0
        %1102 = vmatprep.subr.mxu0 0.0
        %1103 = vmatpush2.msra.mxu0 0.0
        %1104 = vmatprep.subr.mxu0 0.0
        %1105 = vmatpush2.msra.mxu0 0.0
        %1106 = vmatprep.subr.mxu0 0.0
        %1107 = vmatpush2.msra.mxu0 0.0
        %1108 = vmatprep.mubr.f32.mxu0 0.0
        %1109 = vmatmul.mubr.f32.gmra.mxu0 %v997
        %v1110 = vpop.f32.mrf.mxu0
        %v1111 = vadd.f32 %v993, %v1110
        %v1112 = vpop.f32.mrf.mxu0
        %1113 = vmatprep.mubr.f32.mxu0 0.0
        %1114 = vmatmul.mubr.f32.gmra.mxu0 %v1000
        %v1115 = vpop.f32.mrf.mxu0
        %v1116 = vadd.f32 %v993, %v1115
        %v1117 = vpop.f32.mrf.mxu0
        %1118 = vmatprep.mubr.f32.mxu0 0.0
        %1119 = vmatmul.mubr.f32.gmra.mxu0 %v1003
        %v1120 = vpop.f32.mrf.mxu0
        %v1121 = vadd.f32 %v993, %v1120
        %v1122 = vpop.f32.mrf.mxu0
        %1123 = vmatprep.mubr.f32.mxu0 0.0
        %1124 = vmatmul.mubr.f32.gmra.mxu0 %v1006
        %v1125 = vpop.f32.mrf.mxu0
        %v1126 = vadd.f32 %v993, %v1125
        %v1127 = vpop.f32.mrf.mxu0
        %1128 = vmatprep.mubr.f32.mxu0 0.0
        %1129 = vmatmul.mubr.f32.gmra.mxu0 %v1009
        %v1130 = vpop.f32.mrf.mxu0
        %v1131 = vadd.f32 %v993, %v1130
        %v1132 = vpop.f32.mrf.mxu0
        %1133 = vmatprep.mubr.f32.mxu0 0.0
        %1134 = vmatmul.mubr.f32.gmra.mxu0 %v1012
        %v1135 = vpop.f32.mrf.mxu0
        %v1136 = vadd.f32 %v993, %v1135
        %v1137 = vpop.f32.mrf.mxu0
        %1138 = vmatprep.mubr.f32.mxu0 0.0
        %1139 = vmatmul.mubr.f32.gmra.mxu0 %v1015
        %v1140 = vpop.f32.mrf.mxu0
        %v1141 = vadd.f32 %v993, %v1140
        %v1142 = vpop.f32.mrf.mxu0
        %1143 = vmatprep.mubr.f32.mxu0 0.0
        %1144 = vmatmul.mubr.f32.gmra.mxu0 %v1018
        %v1145 = vpop.f32.mrf.mxu0
        %v1146 = vadd.f32 %v993, %v1145
        %v1147 = vpop.f32.mrf.mxu0
        %1148 = vmatprep.mubr.f32.mxu0 0.0
        %1149 = vmatmul.mubr.f32.gmra.mxu0 %v1021
        %v1150 = vpop.f32.mrf.mxu0
        %v1151 = vadd.f32 %v993, %v1150
        %v1152 = vpop.f32.mrf.mxu0
        %1153 = vmatprep.mubr.f32.mxu0 0.0
        %1154 = vmatmul.mubr.f32.gmra.mxu0 %v1024
        %v1155 = vpop.f32.mrf.mxu0
        %v1156 = vadd.f32 %v993, %v1155
        %v1157 = vpop.f32.mrf.mxu0
        %1158 = vmatprep.mubr.f32.mxu0 0.0
        %1159 = vmatmul.mubr.f32.gmra.mxu0 %v1027
        %v1160 = vpop.f32.mrf.mxu0
        %v1161 = vadd.f32 %v993, %v1160
        %v1162 = vpop.f32.mrf.mxu0
        %1163 = vmatprep.mubr.f32.mxu0 0.0
        %1164 = vmatmul.mubr.f32.gmra.mxu0 %v1030
        %v1165 = vpop.f32.mrf.mxu0
        %v1166 = vadd.f32 %v993, %v1165
        %v1167 = vpop.f32.mrf.mxu0
        %1168 = vmatprep.mubr.f32.mxu0 0.0
        %1169 = vmatmul.mubr.f32.gmra.mxu0 %v1033
        %v1170 = vpop.f32.mrf.mxu0
        %v1171 = vadd.f32 %v993, %v1170
        %v1172 = vpop.f32.mrf.mxu0
        %1173 = vmatprep.mubr.f32.mxu0 0.0
        %1174 = vmatmul.mubr.f32.gmra.mxu0 %v1036
        %v1175 = vpop.f32.mrf.mxu0
        %v1176 = vadd.f32 %v993, %v1175
        %v1177 = vpop.f32.mrf.mxu0
        %1178 = vmatprep.mubr.f32.mxu0 0.0
        %1179 = vmatmul.mubr.f32.gmra.mxu0 %v1039
        %v1180 = vpop.f32.mrf.mxu0
        %v1181 = vadd.f32 %v993, %v1180
        %v1182 = vpop.f32.mrf.mxu0
        %1183 = vmatprep.mubr.f32.mxu0 0.0
        %1184 = vmatmul.mubr.f32.gmra.mxu0 %v1042
        %v1185 = vpop.f32.mrf.mxu0
        %v1186 = vadd.f32 %v993, %v1185
        %v1187 = vpop.f32.mrf.mxu0
        %1188 = vdwg.mxu0
        %1189 = vst.msk [vmem:[%s470] sm:$0xff] %vm722, %v1111
        %1190 = vst.msk [vmem:[%s470 + $0x8] sm:$0xff] %vm722, %v1116
        %1191 = vst.msk [vmem:[%s470 + $0x10] sm:$0xff] %vm722, %v1121
        %1192 = vst.msk [vmem:[%s470 + $0x18] sm:$0xff] %vm722, %v1126
        %1193 = vst.msk [vmem:[%s470 + $0x20] sm:$0xff] %vm722, %v1131
        %1194 = vst.msk [vmem:[%s470 + $0x28] sm:$0xff] %vm722, %v1136
        %1195 = vst.msk [vmem:[%s470 + $0x30] sm:$0xff] %vm722, %v1141
        %1196 = vst.msk [vmem:[%s470 + $0x38] sm:$0xff] %vm722, %v1146
        %1197 = vst.msk [vmem:[%s470 + $0x40] sm:$0xff] %vm722, %v1151
        %1198 = vst.msk [vmem:[%s470 + $0x48] sm:$0xff] %vm722, %v1156
        %1199 = vst.msk [vmem:[%s470 + $0x50] sm:$0xff] %vm722, %v1161
        %1200 = vst.msk [vmem:[%s470 + $0x58] sm:$0xff] %vm722, %v1166
        %1201 = vst.msk [vmem:[%s470 + $0x60] sm:$0xff] %vm722, %v1171
        %1202 = vst.msk [vmem:[%s470 + $0x68] sm:$0xff] %vm722, %v1176
        %1203 = vst.msk [vmem:[%s470 + $0x70] sm:$0xff] %vm722, %v1181
        %1204 = vst.msk [vmem:[%s470 + $0x78] sm:$0xff] %vm722, %v1186
        %v1205 = vld [vmem:[%s5] sm:$0xff]
        %v1206 = vld [vmem:[%s5 + $0x8] sm:$0xff]
        %v1208 = vsel %vm722, %v505, 0
        %v1211 = vsel %vm722, %v506, 0
        %v1214 = vsel %vm722, %v507, 0
        %v1217 = vsel %vm722, %v508, 0
        %v1220 = vsel %vm722, %v509, 0
        %v1223 = vsel %vm722, %v510, 0
        %v1226 = vsel %vm722, %v511, 0
        %v1229 = vsel %vm722, %v512, 0
        %v1232 = vsel %vm722, %v513, 0
        %v1235 = vsel %vm722, %v514, 0
        %v1238 = vsel %vm722, %v515, 0
        %v1241 = vsel %vm722, %v516, 0
        %v1244 = vsel %vm722, %v517, 0
        %v1247 = vsel %vm722, %v518, 0
        %v1250 = vsel %vm722, %v519, 0
        %v1253 = vsel %vm722, %v520, 0
        %1255 = vmatprep.subr.mxu0 0.0
        %1256 = vmatpush1.msra.mxu0 0.0
        %1257 = vmatprep.subr.mxu0 0.0
        %1258 = vmatpush1.msra.mxu0 0.0
        %1259 = vmatprep.subr.mxu0 0.0
        %1260 = vmatpush1.msra.mxu0 0.0
        %1261 = vmatprep.subr.mxu0 0.0
        %1262 = vmatpush1.msra.mxu0 0.0
        %1263 = vmatprep.subr.mxu0 0.0
        %1264 = vmatpush1.msra.mxu0 0.0
        %1265 = vmatprep.subr.mxu0 0.0
        %1266 = vmatpush1.msra.mxu0 0.0
        %1267 = vmatprep.subr.mxu0 0.0
        %1268 = vmatpush1.msra.mxu0 0.0
        %1269 = vmatprep.subr.mxu0 0.0
        %1270 = vmatpush1.msra.mxu0 0.0
        %1271 = vmatprep.subr.mxu0 0.0
        %1272 = vmatpush1.msra.mxu0 0.0
        %1273 = vmatprep.subr.mxu0 0.0
        %1274 = vmatpush1.msra.mxu0 0.0
        %1275 = vmatprep.subr.mxu0 0.0
        %1276 = vmatpush1.msra.mxu0 0.0
        %1277 = vmatprep.subr.mxu0 0.0
        %1278 = vmatpush1.msra.mxu0 0.0
        %1279 = vmatprep.subr.mxu0 0.0
        %1280 = vmatpush1.msra.mxu0 0.0
        %1281 = vmatprep.subr.mxu0 0.0
        %1282 = vmatpush1.msra.mxu0 0.0
        %1283 = vmatprep.subr.mxu0 0.0
        %1284 = vmatpush1.msra.mxu0 %v1206
        %1285 = vmatprep.subr.mxu0 0.0
        %1286 = vmatpush1.msra.mxu0 %v1205
        %1287 = vmatprep.subr.mxu0 0.0
        %1288 = vmatpush2.msra.mxu0 0.0
        %1289 = vmatprep.subr.mxu0 0.0
        %1290 = vmatpush2.msra.mxu0 0.0
        %1291 = vmatprep.subr.mxu0 0.0
        %1292 = vmatpush2.msra.mxu0 0.0
        %1293 = vmatprep.subr.mxu0 0.0
        %1294 = vmatpush2.msra.mxu0 0.0
        %1295 = vmatprep.subr.mxu0 0.0
        %1296 = vmatpush2.msra.mxu0 0.0
        %1297 = vmatprep.subr.mxu0 0.0
        %1298 = vmatpush2.msra.mxu0 0.0
        %1299 = vmatprep.subr.mxu0 0.0
        %1300 = vmatpush2.msra.mxu0 0.0
        %1301 = vmatprep.subr.mxu0 0.0
        %1302 = vmatpush2.msra.mxu0 0.0
        %1303 = vmatprep.subr.mxu0 0.0
        %1304 = vmatpush2.msra.mxu0 0.0
        %1305 = vmatprep.subr.mxu0 0.0
        %1306 = vmatpush2.msra.mxu0 0.0
        %1307 = vmatprep.subr.mxu0 0.0
        %1308 = vmatpush2.msra.mxu0 0.0
        %1309 = vmatprep.subr.mxu0 0.0
        %1310 = vmatpush2.msra.mxu0 0.0
        %1311 = vmatprep.subr.mxu0 0.0
        %1312 = vmatpush2.msra.mxu0 0.0
        %1313 = vmatprep.subr.mxu0 0.0
        %1314 = vmatpush2.msra.mxu0 0.0
        %1315 = vmatprep.subr.mxu0 0.0
        %1316 = vmatpush2.msra.mxu0 0.0
        %1317 = vmatprep.subr.mxu0 0.0
        %1318 = vmatpush2.msra.mxu0 0.0
        %1319 = vmatprep.mubr.f32.mxu0 0.0
        %1320 = vmatmul.mubr.f32.gmra.mxu0 %v1208
        %v1321 = vpop.f32.mrf.mxu0
        %v1322 = vadd.f32 0.0, %v1321
        %v1323 = vpop.f32.mrf.mxu0
        %1324 = vmatprep.mubr.f32.mxu0 0.0
        %1325 = vmatmul.mubr.f32.gmra.mxu0 %v1211
        %v1326 = vpop.f32.mrf.mxu0
        %v1327 = vadd.f32 0.0, %v1326
        %v1328 = vpop.f32.mrf.mxu0
        %1329 = vmatprep.mubr.f32.mxu0 0.0
        %1330 = vmatmul.mubr.f32.gmra.mxu0 %v1214
        %v1331 = vpop.f32.mrf.mxu0
        %v1332 = vadd.f32 0.0, %v1331
        %v1333 = vpop.f32.mrf.mxu0
        %1334 = vmatprep.mubr.f32.mxu0 0.0
        %1335 = vmatmul.mubr.f32.gmra.mxu0 %v1217
        %v1336 = vpop.f32.mrf.mxu0
        %v1337 = vadd.f32 0.0, %v1336
        %v1338 = vpop.f32.mrf.mxu0
        %1339 = vmatprep.mubr.f32.mxu0 0.0
        %1340 = vmatmul.mubr.f32.gmra.mxu0 %v1220
        %v1341 = vpop.f32.mrf.mxu0
        %v1342 = vadd.f32 0.0, %v1341
        %v1343 = vpop.f32.mrf.mxu0
        %1344 = vmatprep.mubr.f32.mxu0 0.0
        %1345 = vmatmul.mubr.f32.gmra.mxu0 %v1223
        %v1346 = vpop.f32.mrf.mxu0
        %v1347 = vadd.f32 0.0, %v1346
        %v1348 = vpop.f32.mrf.mxu0
        %1349 = vmatprep.mubr.f32.mxu0 0.0
        %1350 = vmatmul.mubr.f32.gmra.mxu0 %v1226
        %v1351 = vpop.f32.mrf.mxu0
        %v1352 = vadd.f32 0.0, %v1351
        %v1353 = vpop.f32.mrf.mxu0
        %1354 = vmatprep.mubr.f32.mxu0 0.0
        %1355 = vmatmul.mubr.f32.gmra.mxu0 %v1229
        %v1356 = vpop.f32.mrf.mxu0
        %v1357 = vadd.f32 0.0, %v1356
        %v1358 = vpop.f32.mrf.mxu0
        %1359 = vmatprep.mubr.f32.mxu0 0.0
        %1360 = vmatmul.mubr.f32.gmra.mxu0 %v1232
        %v1361 = vpop.f32.mrf.mxu0
        %v1362 = vadd.f32 0.0, %v1361
        %v1363 = vpop.f32.mrf.mxu0
        %1364 = vmatprep.mubr.f32.mxu0 0.0
        %1365 = vmatmul.mubr.f32.gmra.mxu0 %v1235
        %v1366 = vpop.f32.mrf.mxu0
        %v1367 = vadd.f32 0.0, %v1366
        %v1368 = vpop.f32.mrf.mxu0
        %1369 = vmatprep.mubr.f32.mxu0 0.0
        %1370 = vmatmul.mubr.f32.gmra.mxu0 %v1238
        %v1371 = vpop.f32.mrf.mxu0
        %v1372 = vadd.f32 0.0, %v1371
        %v1373 = vpop.f32.mrf.mxu0
        %1374 = vmatprep.mubr.f32.mxu0 0.0
        %1375 = vmatmul.mubr.f32.gmra.mxu0 %v1241
        %v1376 = vpop.f32.mrf.mxu0
        %v1377 = vadd.f32 0.0, %v1376
        %v1378 = vpop.f32.mrf.mxu0
        %1379 = vmatprep.mubr.f32.mxu0 0.0
        %1380 = vmatmul.mubr.f32.gmra.mxu0 %v1244
        %v1381 = vpop.f32.mrf.mxu0
        %v1382 = vadd.f32 0.0, %v1381
        %v1383 = vpop.f32.mrf.mxu0
        %1384 = vmatprep.mubr.f32.mxu0 0.0
        %1385 = vmatmul.mubr.f32.gmra.mxu0 %v1247
        %v1386 = vpop.f32.mrf.mxu0
        %v1387 = vadd.f32 0.0, %v1386
        %v1388 = vpop.f32.mrf.mxu0
        %1389 = vmatprep.mubr.f32.mxu0 0.0
        %1390 = vmatmul.mubr.f32.gmra.mxu0 %v1250
        %v1391 = vpop.f32.mrf.mxu0
        %v1392 = vadd.f32 0.0, %v1391
        %v1393 = vpop.f32.mrf.mxu0
        %1394 = vmatprep.mubr.f32.mxu0 0.0
        %1395 = vmatmul.mubr.f32.gmra.mxu0 %v1253
        %v1396 = vpop.f32.mrf.mxu0
        %v1397 = vadd.f32 0.0, %v1396
        %v1398 = vpop.f32.mrf.mxu0
        %1399 = vdwg.mxu0
        %v1400 = vmul.f32 %v964, %v964
        %v1401 = vmul.f32 %v965, %v965
        %v1402 = vmul.f32 %v966, %v966
        %v1403 = vmul.f32 %v967, %v967
        %v1404 = vmul.f32 %v968, %v968
        %v1405 = vmul.f32 %v969, %v969
        %v1406 = vmul.f32 %v970, %v970
        %v1407 = vmul.f32 %v971, %v971
        %v1408 = vmul.f32 %v972, %v972
        %v1409 = vmul.f32 %v973, %v973
        %v1410 = vmul.f32 %v974, %v974
        %v1411 = vmul.f32 %v975, %v975
        %v1412 = vmul.f32 %v976, %v976
        %v1413 = vmul.f32 %v977, %v977
        %v1414 = vmul.f32 %v978, %v978
        %v1415 = vmul.f32 %v979, %v979
        %v1416 = vsub.f32 1.0, %v1400
        %v1417 = vsub.f32 1.0, %v1401
        %v1418 = vsub.f32 1.0, %v1402
        %v1419 = vsub.f32 1.0, %v1403
        %v1420 = vsub.f32 1.0, %v1404
        %v1421 = vsub.f32 1.0, %v1405
        %v1422 = vsub.f32 1.0, %v1406
        %v1423 = vsub.f32 1.0, %v1407
        %v1424 = vsub.f32 1.0, %v1408
        %v1425 = vsub.f32 1.0, %v1409
        %v1426 = vsub.f32 1.0, %v1410
        %v1427 = vsub.f32 1.0, %v1411
        %v1428 = vsub.f32 1.0, %v1412
        %v1429 = vsub.f32 1.0, %v1413
        %v1430 = vsub.f32 1.0, %v1414
        %v1431 = vsub.f32 1.0, %v1415
        %v1432 = vmul.f32 %v1416, %v1322
        %v1433 = vmul.f32 %v1417, %v1327
        %v1434 = vmul.f32 %v1418, %v1332
        %v1435 = vmul.f32 %v1419, %v1337
        %v1436 = vmul.f32 %v1420, %v1342
        %v1437 = vmul.f32 %v1421, %v1347
        %v1438 = vmul.f32 %v1422, %v1352
        %v1439 = vmul.f32 %v1423, %v1357
        %v1440 = vmul.f32 %v1424, %v1362
        %v1441 = vmul.f32 %v1425, %v1367
        %v1442 = vmul.f32 %v1426, %v1372
        %v1443 = vmul.f32 %v1427, %v1377
        %v1444 = vmul.f32 %v1428, %v1382
        %v1445 = vmul.f32 %v1429, %v1387
        %v1446 = vmul.f32 %v1430, %v1392
        %v1447 = vmul.f32 %v1431, %v1397
        %1464 = vrot.lane.b32.xlu0 %v1322, 64
        %v1465 = vpop.permute.xlu0 %1464
        %1466 = vrot.lane.b32.xlu0 %v1327, 64
        %v1467 = vpop.permute.xlu0 %1466
        %1468 = vrot.lane.b32.xlu0 %v1332, 64
        %v1469 = vpop.permute.xlu0 %1468
        %1470 = vrot.lane.b32.xlu0 %v1337, 64
        %v1471 = vpop.permute.xlu0 %1470
        %1472 = vrot.lane.b32.xlu0 %v1342, 64
        %v1473 = vpop.permute.xlu0 %1472
        %1474 = vrot.lane.b32.xlu0 %v1347, 64
        %v1475 = vpop.permute.xlu0 %1474
        %1476 = vrot.lane.b32.xlu0 %v1352, 64
        %v1477 = vpop.permute.xlu0 %1476
        %1478 = vrot.lane.b32.xlu0 %v1357, 64
        %v1479 = vpop.permute.xlu0 %1478
        %1480 = vrot.lane.b32.xlu0 %v1362, 64
        %v1481 = vpop.permute.xlu0 %1480
        %1482 = vrot.lane.b32.xlu0 %v1367, 64
        %v1483 = vpop.permute.xlu0 %1482
        %1484 = vrot.lane.b32.xlu0 %v1372, 64
        %v1485 = vpop.permute.xlu0 %1484
        %1486 = vrot.lane.b32.xlu0 %v1377, 64
        %v1487 = vpop.permute.xlu0 %1486
        %1488 = vrot.lane.b32.xlu0 %v1382, 64
        %v1489 = vpop.permute.xlu0 %1488
        %1490 = vrot.lane.b32.xlu0 %v1387, 64
        %v1491 = vpop.permute.xlu0 %1490
        %1492 = vrot.lane.b32.xlu0 %v1392, 64
        %v1493 = vpop.permute.xlu0 %1492
        %1494 = vrot.lane.b32.xlu0 %v1397, 64
        %v1495 = vpop.permute.xlu0 %1494
        %v1512 = vmul.f32 %v1432, %v1465
        %v1513 = vmul.f32 %v1433, %v1467
        %v1514 = vmul.f32 %v1434, %v1469
        %v1515 = vmul.f32 %v1435, %v1471
        %v1516 = vmul.f32 %v1436, %v1473
        %v1517 = vmul.f32 %v1437, %v1475
        %v1518 = vmul.f32 %v1438, %v1477
        %v1519 = vmul.f32 %v1439, %v1479
        %v1520 = vmul.f32 %v1440, %v1481
        %v1521 = vmul.f32 %v1441, %v1483
        %v1522 = vmul.f32 %v1442, %v1485
        %v1523 = vmul.f32 %v1443, %v1487
        %v1524 = vmul.f32 %v1444, %v1489
        %v1525 = vmul.f32 %v1445, %v1491
        %v1526 = vmul.f32 %v1446, %v1493
        %v1527 = vmul.f32 %v1447, %v1495
        %v1529 = vsel %vm995, 1.0, 0
        %v1532 = vsel %vm995, %v1512, 0
        %v1535 = vsel %vm995, %v1513, 0
        %v1538 = vsel %vm995, %v1514, 0
        %v1541 = vsel %vm995, %v1515, 0
        %v1544 = vsel %vm995, %v1516, 0
        %v1547 = vsel %vm995, %v1517, 0
        %v1550 = vsel %vm995, %v1518, 0
        %v1553 = vsel %vm995, %v1519, 0
        %v1556 = vsel %vm995, %v1520, 0
        %v1559 = vsel %vm995, %v1521, 0
        %v1562 = vsel %vm995, %v1522, 0
        %v1565 = vsel %vm995, %v1523, 0
        %v1568 = vsel %vm995, %v1524, 0
        %v1571 = vsel %vm995, %v1525, 0
        %v1574 = vsel %vm995, %v1526, 0
        %v1577 = vsel %vm995, %v1527, 0
        %1579 = vmatprep.subr.mxu0 0.0
        %1580 = vmatpush1.xpose.msra.mxu0 %v1577
        %1581 = vmatprep.subr.mxu0 0.0
        %1582 = vmatpush1.xpose.msra.mxu0 %v1574
        %1583 = vmatprep.subr.mxu0 0.0
        %1584 = vmatpush1.xpose.msra.mxu0 %v1571
        %1585 = vmatprep.subr.mxu0 0.0
        %1586 = vmatpush1.xpose.msra.mxu0 %v1568
        %1587 = vmatprep.subr.mxu0 0.0
        %1588 = vmatpush1.xpose.msra.mxu0 %v1565
        %1589 = vmatprep.subr.mxu0 0.0
        %1590 = vmatpush1.xpose.msra.mxu0 %v1562
        %1591 = vmatprep.subr.mxu0 0.0
        %1592 = vmatpush1.xpose.msra.mxu0 %v1559
        %1593 = vmatprep.subr.mxu0 0.0
        %1594 = vmatpush1.xpose.msra.mxu0 %v1556
        %1595 = vmatprep.subr.mxu0 0.0
        %1596 = vmatpush1.xpose.msra.mxu0 %v1553
        %1597 = vmatprep.subr.mxu0 0.0
        %1598 = vmatpush1.xpose.msra.mxu0 %v1550
        %1599 = vmatprep.subr.mxu0 0.0
        %1600 = vmatpush1.xpose.msra.mxu0 %v1547
        %1601 = vmatprep.subr.mxu0 0.0
        %1602 = vmatpush1.xpose.msra.mxu0 %v1544
        %1603 = vmatprep.subr.mxu0 0.0
        %1604 = vmatpush1.xpose.msra.mxu0 %v1541
        %1605 = vmatprep.subr.mxu0 0.0
        %1606 = vmatpush1.xpose.msra.mxu0 %v1538
        %1607 = vmatprep.subr.mxu0 0.0
        %1608 = vmatpush1.xpose.msra.mxu0 %v1535
        %1609 = vmatprep.subr.mxu0 0.0
        %1610 = vmatpush1.xpose.msra.mxu0 %v1532
        %1611 = vmatprep.subr.mxu0 0.0
        %1612 = vmatpush2.xpose.msra.mxu0 0.0
        %1613 = vmatprep.subr.mxu0 0.0
        %1614 = vmatpush2.xpose.msra.mxu0 0.0
        %1615 = vmatprep.subr.mxu0 0.0
        %1616 = vmatpush2.xpose.msra.mxu0 0.0
        %1617 = vmatprep.subr.mxu0 0.0
        %1618 = vmatpush2.xpose.msra.mxu0 0.0
        %1619 = vmatprep.subr.mxu0 0.0
        %1620 = vmatpush2.xpose.msra.mxu0 0.0
        %1621 = vmatprep.subr.mxu0 0.0
        %1622 = vmatpush2.xpose.msra.mxu0 0.0
        %1623 = vmatprep.subr.mxu0 0.0
        %1624 = vmatpush2.xpose.msra.mxu0 0.0
        %1625 = vmatprep.subr.mxu0 0.0
        %1626 = vmatpush2.xpose.msra.mxu0 0.0
        %1627 = vmatprep.subr.mxu0 0.0
        %1628 = vmatpush2.xpose.msra.mxu0 0.0
        %1629 = vmatprep.subr.mxu0 0.0
        %1630 = vmatpush2.xpose.msra.mxu0 0.0
        %1631 = vmatprep.subr.mxu0 0.0
        %1632 = vmatpush2.xpose.msra.mxu0 0.0
        %1633 = vmatprep.subr.mxu0 0.0
        %1634 = vmatpush2.xpose.msra.mxu0 0.0
        %1635 = vmatprep.subr.mxu0 0.0
        %1636 = vmatpush2.xpose.msra.mxu0 0.0
        %1637 = vmatprep.subr.mxu0 0.0
        %1638 = vmatpush2.xpose.msra.mxu0 0.0
        %1639 = vmatprep.subr.mxu0 0.0
        %1640 = vmatpush2.xpose.msra.mxu0 0.0
        %1641 = vmatprep.subr.mxu0 0.0
        %1642 = vmatpush2.xpose.msra.mxu0 0.0
        %1643 = vmatprep.mubr.f32.mxu0 0.0
        %1644 = vmatmul.mubr.f32.gmra.mxu0 %v1529
        %v1645 = vpop.f32.mrf.mxu0
        %v1646 = vadd.f32 0.0, %v1645
        %v1647 = vpop.f32.mrf.mxu0
        %1648 = vdwg.mxu0
        %v1649 = vsub.f32 0.0, %v1646
        %1650 = vst [vmem:[%s447] sm:$0x1] %v1649
        %s1651 = smul.u32 16, %s28
        %p1652 = scmp.lt.s32.totalorder %s1651, 31
        %s1653 = scalar_select %p1652, %s1651, 31
        %s1654 = smul.addr %s1653, 8
        %s1655 = scalar_lea.vmem %s11, %s1654
        %s1656 = sand.u32 %s308, 1
        %s1657 = scalar_lea.sflag [#allocation4], %s1656
        %s1658 = sand.u32 %s308, 1
        %s1659 = scalar_lea.vmem [#allocation3], %s1658
        // Predicated region
        $region65: #{tpu_custom_call.1} parent=63 // pred_check
          %p1660 = pneg %p292
        $region66: #{tpu_custom_call.1} parent=63 // pred_check_branch
          %1662 = sbr.rel (%p1660) target = $region68
        $region67: #{tpu_custom_call.1} parent=63 // pred_region
          %s1663 = smul.u32 16, %s28
        $region68: #{tpu_custom_call.1} parent=63 // pred_fallthru
          _
        // Predicated region
        $region69: #{tpu_custom_call.1} parent=63 // pred_check
          %p1664 = pneg %p318
        $region70: #{tpu_custom_call.1} parent=63 // pred_check_branch
          %1666 = sbr.rel (%p1664) target = $region72
        $region71: #{tpu_custom_call.1} parent=63 // pred_region
          %s1668 = ssub.s32 16, 16
          %1669 = vsyncadd %s1657, %s1668
          %s1670 = smul.addr %s28, 16
          %s1671 = scalar_lea.hbm %s12, %s1670
          %s1673 = sshll.u32 %s1659, 4
          %s1674 = int_to_ptr.vmem [resolvable:$true] %s1673
          %1676 = dma.vmem_to_hbm [thread:$0]  %s1674, 16, %s1671, %s1657
        $region72: #{tpu_custom_call.1} parent=63 // pred_fallthru
          _
      $region64: #{tpu_custom_call.1} parent=5 // pred_fallthru
        _
      %p1677 = scmp.le.s32.totalorder 2, %s23
      // Predicated region
      $region73: #{tpu_custom_call.1} parent=5 // pred_check
        %p1678 = pneg %p1677
      $region74: #{tpu_custom_call.1} parent=5 // pred_check_branch
        %1680 = sbr.rel (%p1678) target = $region76
      $region75: #{tpu_custom_call.1} parent=5 // pred_region
        %s1681 = ssub.s32 %s23, 2
        // Predicated region
        $region77: #{tpu_custom_call.1} parent=75 // pred_check
          %p1682 = pneg %p298
        $region78: #{tpu_custom_call.1} parent=75 // pred_check_branch
          %1684 = sbr.rel (%p1682) target = $region80
        $region79: #{tpu_custom_call.1} parent=75 // pred_region
          %s1685 = smul.u32 16, %s29
          %p1686 = scmp.lt.s32.totalorder %s1685, 31
          %s1687 = scalar_select %p1686, %s1685, 31
          %s1688 = smul.addr %s1687, 8
          %s1689 = scalar_lea.vmem %s11, %s1688
        $region80: #{tpu_custom_call.1} parent=75 // pred_fallthru
          _
        // Predicated region
        $region81: #{tpu_custom_call.1} parent=75 // pred_check
          %p1690 = pneg %p324
        $region82: #{tpu_custom_call.1} parent=75 // pred_check_branch
          %1692 = sbr.rel (%p1690) target = $region84
        $region83: #{tpu_custom_call.1} parent=75 // pred_region
          %s1693 = sand.u32 %s309, 1
          %s1694 = scalar_lea.sflag [#allocation4], %s1693
          %s1695 = sand.u32 %s309, 1
          %s1696 = scalar_lea.vmem [#allocation3], %s1695
          %1697 = dma.done %s1694, 16
        $region84: #{tpu_custom_call.1} parent=75 // pred_fallthru
          _
      $region76: #{tpu_custom_call.1} parent=5 // pred_fallthru
        _
    $region6: #{tpu_custom_call.1} parent=1 // loop_footer
      %s27 = sadd.s32 1, %s23
    $region7: #{tpu_custom_call.1} parent=1 // loop_footer_branch
      %22 = sbr.rel target = $region3
    $region8: #{tpu_custom_call.1} parent=1 // loop_exit
      _
    %1698 = vsyncpa [#allocation4], 1
    %s1699 = scalar_lea.sflag [#allocation4], 1
    %1700 = vsyncpa %s1699, 1

</llo_original>
